<compile_context>
chip_gen: v7x
topology: tpu7x:2x2x1
jax: 0.10.0
libtpu: 0.0.40
codegen_flags: <defaults>
</compile_context>

<pallas_src>
import functools

import jax
import jax.numpy as jnp
from jax.experimental import pallas as pl
from jax.experimental.pallas import tpu as pltpu


def _batchnorm(z, g, b, eps=1e-5):
    # training-mode BN over all rows (N*H*W) per channel, biased variance
    mean = jnp.mean(z, axis=0, keepdims=True)
    var = jnp.mean(jnp.square(z - mean), axis=0, keepdims=True)
    return (z - mean) * jax.lax.rsqrt(var + eps) * g + b


def basic_block_kernel(*refs, N, Hout, Wout, Cin, Cout, stride, proj):
    s = stride
    nplanes = s * s
    planes = refs[:nplanes]
    i = nplanes
    w1_ref, g1_ref, b1_ref, w2_ref, g2_ref, b2_ref = refs[i:i + 6]
    i += 6
    if proj:
        ws_ref, gs_ref, bs_ref = refs[i:i + 3]
        i += 3
    out_ref = refs[i]
    h1p_ref = refs[i + 1]

    NHW = N * Hout * Wout

    # ---- conv1: build im2col (NHW, 9*Cin) from the stride-phase planes and do
    # a single K-fused MXU matmul. ----
    taps1 = []
    for dy in range(3):
        for dx in range(3):
            p = (dy % s) * s + (dx % s)
            oy, ox = dy // s, dx // s
            t = planes[p][:, oy:oy + Hout, ox:ox + Wout, :]
            taps1.append(t.reshape(NHW, Cin))
    a1 = jnp.concatenate(taps1, axis=1)                       # (NHW, 9*Cin)
    acc1 = jnp.dot(a1, w1_ref[...], preferred_element_type=jnp.float32)
    h1 = jnp.maximum(_batchnorm(acc1, g1_ref[...], b1_ref[...]), 0.0)

    # ---- pad h1 into VMEM scratch for conv2: zero only the 1-px halo. ----
    zrow = jnp.zeros((N, 1, Wout + 2, Cout), jnp.float32)
    h1p_ref[:, 0:1, :, :] = zrow
    h1p_ref[:, Hout + 1:Hout + 2, :, :] = zrow
    zcol = jnp.zeros((N, Hout, 1, Cout), jnp.float32)
    h1p_ref[:, 1:Hout + 1, 0:1, :] = zcol
    h1p_ref[:, 1:Hout + 1, Wout + 1:Wout + 2, :] = zcol
    h1p_ref[:, 1:Hout + 1, 1:Wout + 1, :] = h1.reshape(N, Hout, Wout, Cout)

    # ---- conv2: single K-fused matmul (NHW, 9*Cout) @ (9*Cout, Cout). ----
    taps2 = []
    for dy in range(3):
        for dx in range(3):
            t = h1p_ref[:, dy:dy + Hout, dx:dx + Wout, :]
            taps2.append(t.reshape(NHW, Cout))
    a2 = jnp.concatenate(taps2, axis=1)                       # (NHW, 9*Cout)
    acc2 = jnp.dot(a2, w2_ref[...], preferred_element_type=jnp.float32)
    o2 = _batchnorm(acc2, g2_ref[...], b2_ref[...])

    # ---- shortcut: centre tap of a1 is exactly x sampled on the output grid,
    # so reuse it instead of passing x a second time. ----
    xs = a1[:, 4 * Cin:5 * Cin]
    if proj:
        sacc = jnp.dot(xs, ws_ref[...], preferred_element_type=jnp.float32)
        res = _batchnorm(sacc, gs_ref[...], bs_ref[...])
    else:
        res = xs                                              # Cin == Cout here

    out_ref[...] = jnp.maximum(o2 + res, 0.0).astype(out_ref.dtype)


def basic_block_pallas(x_nchw, params, stride):
    """Forward pass of BasicBlock.  x_nchw: (N, Cin, H, W) float32."""
    w1, g1, b1, w2, g2, b2, ws, gs, bs = params
    N, Cin, H, W = x_nchw.shape
    Cout = w1.shape[0]
    s = stride
    Hout = (H + 2 - 3) // s + 1
    Wout = (W + 2 - 3) // s + 1
    NHW = N * Hout * Wout
    proj = (s != 1) or (Cin != Cout)

    x_nhwc = jnp.transpose(x_nchw, (0, 2, 3, 1)).astype(jnp.float32)
    xp = jnp.pad(x_nhwc, ((0, 0), (1, 1), (1, 1), (0, 0)))

    # Stride-phase decomposition of the padded input: s*s planes whose combined
    # size equals the padded input (no 9x tap replication).  Tap (dy, dx) of the
    # stride-s 3x3 conv is a unit-stride window of plane (dy % s, dx % s).
    HP, WP = Hout + 2, Wout + 2
    planes = []
    for py in range(s):
        for px in range(s):
            p = xp[:, py::s, px::s, :]
            p = jnp.pad(p, ((0, 0), (0, HP - p.shape[1]),
                            (0, WP - p.shape[2]), (0, 0)))
            planes.append(p)

    # Conv weights (OIHW) -> K-concatenated matmul weights, tap-major ordering
    # matching the in-kernel im2col concatenation.
    w1m = jnp.transpose(w1, (2, 3, 1, 0)).reshape(9 * Cin, Cout)
    w2m = jnp.transpose(w2, (2, 3, 1, 0)).reshape(9 * Cout, Cout)

    inputs = list(planes) + [w1m, g1.reshape(1, Cout), b1.reshape(1, Cout),
                             w2m, g2.reshape(1, Cout), b2.reshape(1, Cout)]
    if proj:
        wsm = jnp.transpose(ws.reshape(Cout, Cin), (1, 0))    # (Cin, Cout)
        inputs += [wsm, gs.reshape(1, Cout), bs.reshape(1, Cout)]

    kern = functools.partial(basic_block_kernel, N=N, Hout=Hout, Wout=Wout,
                             Cin=Cin, Cout=Cout, stride=s, proj=proj)

    out2d = pl.pallas_call(
        kern,
        out_shape=jax.ShapeDtypeStruct((NHW, Cout), jnp.float32),
        in_specs=[pl.BlockSpec(memory_space=pltpu.MemorySpace.VMEM)] * len(inputs),
        out_specs=pl.BlockSpec(memory_space=pltpu.MemorySpace.VMEM),
        scratch_shapes=[pltpu.VMEM((N, Hout + 2, Wout + 2, Cout), jnp.float32)],
    )(*inputs)

    out = out2d.reshape(N, Hout, Wout, Cout)
    return jnp.transpose(out, (0, 3, 1, 2))                   # back to NCHW


def basic_block_reference(x, params, stride):
    """Pure-JAX reference (same training-mode BN semantics)."""
    w1, g1, b1, w2, g2, b2, ws, gs, bs = params

    def conv(x, w, s, pad):
        return jax.lax.conv_general_dilated(
            x, w, (s, s), ((pad, pad), (pad, pad)),
            dimension_numbers=('NCHW', 'OIHW', 'NCHW'))

    def bn(x, g, b):
        mean = jnp.mean(x, axis=(0, 2, 3), keepdims=True)
        var = jnp.mean((x - mean) ** 2, axis=(0, 2, 3), keepdims=True)
        return ((x - mean) / jnp.sqrt(var + 1e-5) * g.reshape(1, -1, 1, 1)
                + b.reshape(1, -1, 1, 1))

    out = jax.nn.relu(bn(conv(x, w1, stride, 1), g1, b1))
    out = bn(conv(out, w2, 1, 1), g2, b2)
    if stride != 1 or x.shape[1] != w1.shape[0]:
        res = bn(conv(x, ws, stride, 0), gs, bs)
    else:
        res = x
    return jax.nn.relu(out + res)


if __name__ == "__main__":
    def make_params(key, cin, cout):
        keys = jax.random.split(key, 9)
        w1 = 0.1 * jax.random.normal(keys[0], (cout, cin, 3, 3), jnp.float32)
        g1 = 1.0 + 0.1 * jax.random.normal(keys[1], (cout,), jnp.float32)
        b1 = 0.1 * jax.random.normal(keys[2], (cout,), jnp.float32)
        w2 = 0.1 * jax.random.normal(keys[3], (cout, cout, 3, 3), jnp.float32)
        g2 = 1.0 + 0.1 * jax.random.normal(keys[4], (cout,), jnp.float32)
        b2 = 0.1 * jax.random.normal(keys[5], (cout,), jnp.float32)
        ws = 0.1 * jax.random.normal(keys[6], (cout, cin, 1, 1), jnp.float32)
        gs = 1.0 + 0.1 * jax.random.normal(keys[7], (cout,), jnp.float32)
        bs = 0.1 * jax.random.normal(keys[8], (cout,), jnp.float32)
        return (w1, g1, b1, w2, g2, b2, ws, gs, bs)

    key = jax.random.PRNGKey(0)
    kx_a, kx_b, kp_a, kp_b = jax.random.split(key, 4)

    # --- projection-shortcut path: in=4, out=8, stride=2 ---
    xa = jax.random.normal(kx_a, (2, 4, 16, 16), jnp.float32)
    pa = make_params(kp_a, 4, 8)
    out_a = jax.block_until_ready(basic_block_pallas(xa, pa, 2))
    ref_a = jax.block_until_ready(basic_block_reference(xa, pa, 2))
    assert out_a.shape == (2, 8, 8, 8)
    assert jnp.allclose(out_a, ref_a, atol=1e-3, rtol=1e-3), \
        "projection path mismatch vs reference"

    # --- identity-shortcut path: in=8, out=8, stride=1 ---
    xb = jax.random.normal(kx_b, (2, 8, 16, 16), jnp.float32)
    pb = make_params(kp_b, 8, 8)
    out_b = jax.block_until_ready(basic_block_pallas(xb, pb, 1))
    ref_b = jax.block_until_ready(basic_block_reference(xb, pb, 1))
    assert out_b.shape == (2, 8, 16, 16)
    assert jnp.allclose(out_b, ref_b, atol=1e-3, rtol=1e-3), \
        "identity path mismatch vs reference"

    print("KERNEL_OK")
</pallas_src>

<mosaic_0001>
module attributes {stable_mosaic.version = 11 : i64} {
  func.func @basic_block_kernel(%arg0: memref<2x10x10x4xf32, #tpu.memory_space<vmem>>, %arg1: memref<2x10x10x4xf32, #tpu.memory_space<vmem>>, %arg2: memref<2x10x10x4xf32, #tpu.memory_space<vmem>>, %arg3: memref<2x10x10x4xf32, #tpu.memory_space<vmem>>, %arg4: memref<36x8xf32, #tpu.memory_space<vmem>>, %arg5: memref<1x8xf32, #tpu.memory_space<vmem>>, %arg6: memref<1x8xf32, #tpu.memory_space<vmem>>, %arg7: memref<72x8xf32, #tpu.memory_space<vmem>>, %arg8: memref<1x8xf32, #tpu.memory_space<vmem>>, %arg9: memref<1x8xf32, #tpu.memory_space<vmem>>, %arg10: memref<4x8xf32, #tpu.memory_space<vmem>>, %arg11: memref<1x8xf32, #tpu.memory_space<vmem>>, %arg12: memref<1x8xf32, #tpu.memory_space<vmem>>, %arg13: memref<128x8xf32, #tpu.memory_space<vmem>>, %arg14: memref<2x10x10x8xf32, #tpu.memory_space<vmem>>) attributes {dimension_semantics = [], scalar_prefetch = 0 : i64, scratch_operands = 1 : i64, tpu.core_type = #tpu.core_type<tc>} {
    %c0 = arith.constant 0 : index
    %c0_0 = arith.constant 0 : index
    %c0_1 = arith.constant 0 : index
    %c0_2 = arith.constant 0 : index
    %0 = vector.load %arg0[%c0, %c0_0, %c0_1, %c0_2] : memref<2x10x10x4xf32, #tpu.memory_space<vmem>>, vector<2x8x8x4xf32>
    %1 = vector.shape_cast %0 : vector<2x8x8x4xf32> to vector<128x4xf32>
    %c0_3 = arith.constant 0 : index
    %c0_4 = arith.constant 0 : index
    %c0_5 = arith.constant 0 : index
    %c0_6 = arith.constant 0 : index
    %2 = vector.load %arg1[%c0_3, %c0_4, %c0_5, %c0_6] : memref<2x10x10x4xf32, #tpu.memory_space<vmem>>, vector<2x8x8x4xf32>
    %3 = vector.shape_cast %2 : vector<2x8x8x4xf32> to vector<128x4xf32>
    %c0_7 = arith.constant 0 : index
    %c0_8 = arith.constant 0 : index
    %c1 = arith.constant 1 : index
    %c0_9 = arith.constant 0 : index
    %4 = vector.load %arg0[%c0_7, %c0_8, %c1, %c0_9] : memref<2x10x10x4xf32, #tpu.memory_space<vmem>>, vector<2x8x8x4xf32>
    %5 = vector.shape_cast %4 : vector<2x8x8x4xf32> to vector<128x4xf32>
    %c0_10 = arith.constant 0 : index
    %c0_11 = arith.constant 0 : index
    %c0_12 = arith.constant 0 : index
    %c0_13 = arith.constant 0 : index
    %6 = vector.load %arg2[%c0_10, %c0_11, %c0_12, %c0_13] : memref<2x10x10x4xf32, #tpu.memory_space<vmem>>, vector<2x8x8x4xf32>
    %7 = vector.shape_cast %6 : vector<2x8x8x4xf32> to vector<128x4xf32>
    %c0_14 = arith.constant 0 : index
    %c0_15 = arith.constant 0 : index
    %c0_16 = arith.constant 0 : index
    %c0_17 = arith.constant 0 : index
    %8 = vector.load %arg3[%c0_14, %c0_15, %c0_16, %c0_17] : memref<2x10x10x4xf32, #tpu.memory_space<vmem>>, vector<2x8x8x4xf32>
    %9 = vector.shape_cast %8 : vector<2x8x8x4xf32> to vector<128x4xf32>
    %c0_18 = arith.constant 0 : index
    %c0_19 = arith.constant 0 : index
    %c1_20 = arith.constant 1 : index
    %c0_21 = arith.constant 0 : index
    %10 = vector.load %arg2[%c0_18, %c0_19, %c1_20, %c0_21] : memref<2x10x10x4xf32, #tpu.memory_space<vmem>>, vector<2x8x8x4xf32>
    %11 = vector.shape_cast %10 : vector<2x8x8x4xf32> to vector<128x4xf32>
    %c0_22 = arith.constant 0 : index
    %c1_23 = arith.constant 1 : index
    %c0_24 = arith.constant 0 : index
    %c0_25 = arith.constant 0 : index
    %12 = vector.load %arg0[%c0_22, %c1_23, %c0_24, %c0_25] : memref<2x10x10x4xf32, #tpu.memory_space<vmem>>, vector<2x8x8x4xf32>
    %13 = vector.shape_cast %12 : vector<2x8x8x4xf32> to vector<128x4xf32>
    %c0_26 = arith.constant 0 : index
    %c1_27 = arith.constant 1 : index
    %c0_28 = arith.constant 0 : index
    %c0_29 = arith.constant 0 : index
    %14 = vector.load %arg1[%c0_26, %c1_27, %c0_28, %c0_29] : memref<2x10x10x4xf32, #tpu.memory_space<vmem>>, vector<2x8x8x4xf32>
    %15 = vector.shape_cast %14 : vector<2x8x8x4xf32> to vector<128x4xf32>
    %c0_30 = arith.constant 0 : index
    %c1_31 = arith.constant 1 : index
    %c1_32 = arith.constant 1 : index
    %c0_33 = arith.constant 0 : index
    %16 = vector.load %arg0[%c0_30, %c1_31, %c1_32, %c0_33] : memref<2x10x10x4xf32, #tpu.memory_space<vmem>>, vector<2x8x8x4xf32>
    %17 = vector.shape_cast %16 : vector<2x8x8x4xf32> to vector<128x4xf32>
    %18 = tpu.concatenate %1, %3, %5, %7, %9, %11, %13, %15, %17 in 1 : vector<128x4xf32>, vector<128x4xf32>, vector<128x4xf32>, vector<128x4xf32>, vector<128x4xf32>, vector<128x4xf32>, vector<128x4xf32>, vector<128x4xf32>, vector<128x4xf32> -> vector<128x36xf32>
    %c0_34 = arith.constant 0 : index
    %c0_35 = arith.constant 0 : index
    %19 = vector.load %arg4[%c0_34, %c0_35] : memref<36x8xf32, #tpu.memory_space<vmem>>, vector<36x8xf32>
    %cst = arith.constant dense<0.000000e+00> : vector<128x8xf32>
    %20 = tpu.matmul %18, %19, %cst {dimension_numbers = #tpu.dot_dimension_numbers<[1], [0], [0], [1], [0, 0, 1, 1], [], []>} : vector<128x36xf32>, vector<36x8xf32>, vector<128x8xf32> -> vector<128x8xf32>
    %c0_36 = arith.constant 0 : index
    %c0_37 = arith.constant 0 : index
    %21 = vector.load %arg5[%c0_36, %c0_37] : memref<1x8xf32, #tpu.memory_space<vmem>>, vector<1x8xf32>
    %c0_38 = arith.constant 0 : index
    %c0_39 = arith.constant 0 : index
    %22 = vector.load %arg6[%c0_38, %c0_39] : memref<1x8xf32, #tpu.memory_space<vmem>>, vector<1x8xf32>
    %cst_40 = arith.constant dense<0.000000e+00> : vector<8xf32>
    %23 = vector.multi_reduction <add>, %20, %cst_40 [0] : vector<128x8xf32> to vector<8xf32>
    %24 = vector.shape_cast %23 : vector<8xf32> to vector<1x8xf32>
    %cst_41 = arith.constant 1.280000e+02 : f32
    %25 = vector.broadcast %cst_41 : f32 to vector<1x8xf32>
    %26 = arith.divf %24, %25 : vector<1x8xf32>
    %27 = vector.broadcast %26 : vector<1x8xf32> to vector<128x8xf32>
    %28 = arith.subf %20, %27 : vector<128x8xf32>
    %29 = arith.mulf %28, %28 : vector<128x8xf32>
    %cst_42 = arith.constant dense<0.000000e+00> : vector<8xf32>
    %30 = vector.multi_reduction <add>, %29, %cst_42 [0] : vector<128x8xf32> to vector<8xf32>
    %31 = vector.shape_cast %30 : vector<8xf32> to vector<1x8xf32>
    %cst_43 = arith.constant 1.280000e+02 : f32
    %32 = vector.broadcast %cst_43 : f32 to vector<1x8xf32>
    %33 = arith.divf %31, %32 : vector<1x8xf32>
    %34 = vector.broadcast %26 : vector<1x8xf32> to vector<128x8xf32>
    %35 = arith.subf %20, %34 : vector<128x8xf32>
    %cst_44 = arith.constant 9.99999974E-6 : f32
    %36 = vector.broadcast %cst_44 : f32 to vector<1x8xf32>
    %37 = arith.addf %33, %36 : vector<1x8xf32>
    %38 = math.rsqrt %37 : vector<1x8xf32>
    %39 = vector.broadcast %38 : vector<1x8xf32> to vector<128x8xf32>
    %40 = arith.mulf %35, %39 : vector<128x8xf32>
    %41 = vector.broadcast %21 : vector<1x8xf32> to vector<128x8xf32>
    %42 = arith.mulf %40, %41 : vector<128x8xf32>
    %43 = vector.broadcast %22 : vector<1x8xf32> to vector<128x8xf32>
    %44 = arith.addf %42, %43 : vector<128x8xf32>
    %cst_45 = arith.constant 0.000000e+00 : f32
    %45 = vector.broadcast %cst_45 : f32 to vector<128x8xf32>
    %46 = arith.maximumf %44, %45 : vector<128x8xf32>
    %cst_46 = arith.constant 0.000000e+00 : f32
    %47 = vector.broadcast %cst_46 : f32 to vector<2x1x10x8xf32>
    %c0_47 = arith.constant 0 : index
    %c0_48 = arith.constant 0 : index
    %c0_49 = arith.constant 0 : index
    %c0_50 = arith.constant 0 : index
    %48 = vector.load %arg14[%c0_47, %c0_48, %c0_49, %c0_50] : memref<2x10x10x8xf32, #tpu.memory_space<vmem>>, vector<2x1x10x8xf32>
    tpu.vector_store %arg14[%c0_47, %c0_48, %c0_49, %c0_50], %47 {strides = array<i32>} : memref<2x10x10x8xf32, #tpu.memory_space<vmem>>, vector<2x1x10x8xf32>,
    %c0_51 = arith.constant 0 : index
    %c9 = arith.constant 9 : index
    %c0_52 = arith.constant 0 : index
    %c0_53 = arith.constant 0 : index
    %49 = vector.load %arg14[%c0_51, %c9, %c0_52, %c0_53] : memref<2x10x10x8xf32, #tpu.memory_space<vmem>>, vector<2x1x10x8xf32>
    tpu.vector_store %arg14[%c0_51, %c9, %c0_52, %c0_53], %47 {strides = array<i32>} : memref<2x10x10x8xf32, #tpu.memory_space<vmem>>, vector<2x1x10x8xf32>,
    %cst_54 = arith.constant 0.000000e+00 : f32
    %50 = vector.broadcast %cst_54 : f32 to vector<2x8x1x8xf32>
    %c0_55 = arith.constant 0 : index
    %c1_56 = arith.constant 1 : index
    %c0_57 = arith.constant 0 : index
    %c0_58 = arith.constant 0 : index
    %51 = vector.load %arg14[%c0_55, %c1_56, %c0_57, %c0_58] : memref<2x10x10x8xf32, #tpu.memory_space<vmem>>, vector<2x8x1x8xf32>
    tpu.vector_store %arg14[%c0_55, %c1_56, %c0_57, %c0_58], %50 {strides = array<i32>} : memref<2x10x10x8xf32, #tpu.memory_space<vmem>>, vector<2x8x1x8xf32>,
    %c0_59 = arith.constant 0 : index
    %c1_60 = arith.constant 1 : index
    %c9_61 = arith.constant 9 : index
    %c0_62 = arith.constant 0 : index
    %52 = vector.load %arg14[%c0_59, %c1_60, %c9_61, %c0_62] : memref<2x10x10x8xf32, #tpu.memory_space<vmem>>, vector<2x8x1x8xf32>
    tpu.vector_store %arg14[%c0_59, %c1_60, %c9_61, %c0_62], %50 {strides = array<i32>} : memref<2x10x10x8xf32, #tpu.memory_space<vmem>>, vector<2x8x1x8xf32>,
    %53 = vector.shape_cast %46 : vector<128x8xf32> to vector<2x8x8x8xf32>
    %c0_63 = arith.constant 0 : index
    %c1_64 = arith.constant 1 : index
    %c1_65 = arith.constant 1 : index
    %c0_66 = arith.constant 0 : index
    %54 = vector.load %arg14[%c0_63, %c1_64, %c1_65, %c0_66] : memref<2x10x10x8xf32, #tpu.memory_space<vmem>>, vector<2x8x8x8xf32>
    tpu.vector_store %arg14[%c0_63, %c1_64, %c1_65, %c0_66], %53 {strides = array<i32>} : memref<2x10x10x8xf32, #tpu.memory_space<vmem>>, vector<2x8x8x8xf32>,
    %c0_67 = arith.constant 0 : index
    %c0_68 = arith.constant 0 : index
    %c0_69 = arith.constant 0 : index
    %c0_70 = arith.constant 0 : index
    %55 = vector.load %arg14[%c0_67, %c0_68, %c0_69, %c0_70] : memref<2x10x10x8xf32, #tpu.memory_space<vmem>>, vector<2x8x8x8xf32>
    %56 = vector.shape_cast %55 : vector<2x8x8x8xf32> to vector<128x8xf32>
    %c0_71 = arith.constant 0 : index
    %c0_72 = arith.constant 0 : index
    %c1_73 = arith.constant 1 : index
    %c0_74 = arith.constant 0 : index
    %57 = vector.load %arg14[%c0_71, %c0_72, %c1_73, %c0_74] : memref<2x10x10x8xf32, #tpu.memory_space<vmem>>, vector<2x8x8x8xf32>
    %58 = vector.shape_cast %57 : vector<2x8x8x8xf32> to vector<128x8xf32>
    %c0_75 = arith.constant 0 : index
    %c0_76 = arith.constant 0 : index
    %c2 = arith.constant 2 : index
    %c0_77 = arith.constant 0 : index
    %59 = vector.load %arg14[%c0_75, %c0_76, %c2, %c0_77] : memref<2x10x10x8xf32, #tpu.memory_space<vmem>>, vector<2x8x8x8xf32>
    %60 = vector.shape_cast %59 : vector<2x8x8x8xf32> to vector<128x8xf32>
    %c0_78 = arith.constant 0 : index
    %c1_79 = arith.constant 1 : index
    %c0_80 = arith.constant 0 : index
    %c0_81 = arith.constant 0 : index
    %61 = vector.load %arg14[%c0_78, %c1_79, %c0_80, %c0_81] : memref<2x10x10x8xf32, #tpu.memory_space<vmem>>, vector<2x8x8x8xf32>
    %62 = vector.shape_cast %61 : vector<2x8x8x8xf32> to vector<128x8xf32>
    %c0_82 = arith.constant 0 : index
    %c1_83 = arith.constant 1 : index
    %c1_84 = arith.constant 1 : index
    %c0_85 = arith.constant 0 : index
    %63 = vector.load %arg14[%c0_82, %c1_83, %c1_84, %c0_85] : memref<2x10x10x8xf32, #tpu.memory_space<vmem>>, vector<2x8x8x8xf32>
    %64 = vector.shape_cast %63 : vector<2x8x8x8xf32> to vector<128x8xf32>
    %c0_86 = arith.constant 0 : index
    %c1_87 = arith.constant 1 : index
    %c2_88 = arith.constant 2 : index
    %c0_89 = arith.constant 0 : index
    %65 = vector.load %arg14[%c0_86, %c1_87, %c2_88, %c0_89] : memref<2x10x10x8xf32, #tpu.memory_space<vmem>>, vector<2x8x8x8xf32>
    %66 = vector.shape_cast %65 : vector<2x8x8x8xf32> to vector<128x8xf32>
    %c0_90 = arith.constant 0 : index
    %c2_91 = arith.constant 2 : index
    %c0_92 = arith.constant 0 : index
    %c0_93 = arith.constant 0 : index
    %67 = vector.load %arg14[%c0_90, %c2_91, %c0_92, %c0_93] : memref<2x10x10x8xf32, #tpu.memory_space<vmem>>, vector<2x8x8x8xf32>
    %68 = vector.shape_cast %67 : vector<2x8x8x8xf32> to vector<128x8xf32>
    %c0_94 = arith.constant 0 : index
    %c2_95 = arith.constant 2 : index
    %c1_96 = arith.constant 1 : index
    %c0_97 = arith.constant 0 : index
    %69 = vector.load %arg14[%c0_94, %c2_95, %c1_96, %c0_97] : memref<2x10x10x8xf32, #tpu.memory_space<vmem>>, vector<2x8x8x8xf32>
    %70 = vector.shape_cast %69 : vector<2x8x8x8xf32> to vector<128x8xf32>
    %c0_98 = arith.constant 0 : index
    %c2_99 = arith.constant 2 : index
    %c2_100 = arith.constant 2 : index
    %c0_101 = arith.constant 0 : index
    %71 = vector.load %arg14[%c0_98, %c2_99, %c2_100, %c0_101] : memref<2x10x10x8xf32, #tpu.memory_space<vmem>>, vector<2x8x8x8xf32>
    %72 = vector.shape_cast %71 : vector<2x8x8x8xf32> to vector<128x8xf32>
    %73 = tpu.concatenate %56, %58, %60, %62, %64, %66, %68, %70, %72 in 1 : vector<128x8xf32>, vector<128x8xf32>, vector<128x8xf32>, vector<128x8xf32>, vector<128x8xf32>, vector<128x8xf32>, vector<128x8xf32>, vector<128x8xf32>, vector<128x8xf32> -> vector<128x72xf32>
    %c0_102 = arith.constant 0 : index
    %c0_103 = arith.constant 0 : index
    %74 = vector.load %arg7[%c0_102, %c0_103] : memref<72x8xf32, #tpu.memory_space<vmem>>, vector<72x8xf32>
    %cst_104 = arith.constant dense<0.000000e+00> : vector<128x8xf32>
    %75 = tpu.matmul %73, %74, %cst_104 {dimension_numbers = #tpu.dot_dimension_numbers<[1], [0], [0], [1], [0, 0, 1, 1], [], []>} : vector<128x72xf32>, vector<72x8xf32>, vector<128x8xf32> -> vector<128x8xf32>
    %c0_105 = arith.constant 0 : index
    %c0_106 = arith.constant 0 : index
    %76 = vector.load %arg8[%c0_105, %c0_106] : memref<1x8xf32, #tpu.memory_space<vmem>>, vector<1x8xf32>
    %c0_107 = arith.constant 0 : index
    %c0_108 = arith.constant 0 : index
    %77 = vector.load %arg9[%c0_107, %c0_108] : memref<1x8xf32, #tpu.memory_space<vmem>>, vector<1x8xf32>
    %cst_109 = arith.constant dense<0.000000e+00> : vector<8xf32>
    %78 = vector.multi_reduction <add>, %75, %cst_109 [0] : vector<128x8xf32> to vector<8xf32>
    %79 = vector.shape_cast %78 : vector<8xf32> to vector<1x8xf32>
    %cst_110 = arith.constant 1.280000e+02 : f32
    %80 = vector.broadcast %cst_110 : f32 to vector<1x8xf32>
    %81 = arith.divf %79, %80 : vector<1x8xf32>
    %82 = vector.broadcast %81 : vector<1x8xf32> to vector<128x8xf32>
    %83 = arith.subf %75, %82 : vector<128x8xf32>
    %84 = arith.mulf %83, %83 : vector<128x8xf32>
    %cst_111 = arith.constant dense<0.000000e+00> : vector<8xf32>
    %85 = vector.multi_reduction <add>, %84, %cst_111 [0] : vector<128x8xf32> to vector<8xf32>
    %86 = vector.shape_cast %85 : vector<8xf32> to vector<1x8xf32>
    %cst_112 = arith.constant 1.280000e+02 : f32
    %87 = vector.broadcast %cst_112 : f32 to vector<1x8xf32>
    %88 = arith.divf %86, %87 : vector<1x8xf32>
    %89 = vector.broadcast %81 : vector<1x8xf32> to vector<128x8xf32>
    %90 = arith.subf %75, %89 : vector<128x8xf32>
    %cst_113 = arith.constant 9.99999974E-6 : f32
    %91 = vector.broadcast %cst_113 : f32 to vector<1x8xf32>
    %92 = arith.addf %88, %91 : vector<1x8xf32>
    %93 = math.rsqrt %92 : vector<1x8xf32>
    %94 = vector.broadcast %93 : vector<1x8xf32> to vector<128x8xf32>
    %95 = arith.mulf %90, %94 : vector<128x8xf32>
    %96 = vector.broadcast %76 : vector<1x8xf32> to vector<128x8xf32>
    %97 = arith.mulf %95, %96 : vector<128x8xf32>
    %98 = vector.broadcast %77 : vector<1x8xf32> to vector<128x8xf32>
    %99 = arith.addf %97, %98 : vector<128x8xf32>
    %100 = vector.extract_strided_slice %18 {offsets = [0, 16], sizes = [128, 4], strides = [1, 1]} : vector<128x36xf32> to vector<128x4xf32>
    %c0_114 = arith.constant 0 : index
    %c0_115 = arith.constant 0 : index
    %101 = vector.load %arg10[%c0_114, %c0_115] : memref<4x8xf32, #tpu.memory_space<vmem>>, vector<4x8xf32>
    %cst_116 = arith.constant dense<0.000000e+00> : vector<128x8xf32>
    %102 = tpu.matmul %100, %101, %cst_116 {dimension_numbers = #tpu.dot_dimension_numbers<[1], [0], [0], [1], [0, 0, 1, 1], [], []>} : vector<128x4xf32>, vector<4x8xf32>, vector<128x8xf32> -> vector<128x8xf32>
    %c0_117 = arith.constant 0 : index
    %c0_118 = arith.constant 0 : index
    %103 = vector.load %arg11[%c0_117, %c0_118] : memref<1x8xf32, #tpu.memory_space<vmem>>, vector<1x8xf32>
    %c0_119 = arith.constant 0 : index
    %c0_120 = arith.constant 0 : index
    %104 = vector.load %arg12[%c0_119, %c0_120] : memref<1x8xf32, #tpu.memory_space<vmem>>, vector<1x8xf32>
    %cst_121 = arith.constant dense<0.000000e+00> : vector<8xf32>
    %105 = vector.multi_reduction <add>, %102, %cst_121 [0] : vector<128x8xf32> to vector<8xf32>
    %106 = vector.shape_cast %105 : vector<8xf32> to vector<1x8xf32>
    %cst_122 = arith.constant 1.280000e+02 : f32
    %107 = vector.broadcast %cst_122 : f32 to vector<1x8xf32>
    %108 = arith.divf %106, %107 : vector<1x8xf32>
    %109 = vector.broadcast %108 : vector<1x8xf32> to vector<128x8xf32>
    %110 = arith.subf %102, %109 : vector<128x8xf32>
    %111 = arith.mulf %110, %110 : vector<128x8xf32>
    %cst_123 = arith.constant dense<0.000000e+00> : vector<8xf32>
    %112 = vector.multi_reduction <add>, %111, %cst_123 [0] : vector<128x8xf32> to vector<8xf32>
    %113 = vector.shape_cast %112 : vector<8xf32> to vector<1x8xf32>
    %cst_124 = arith.constant 1.280000e+02 : f32
    %114 = vector.broadcast %cst_124 : f32 to vector<1x8xf32>
    %115 = arith.divf %113, %114 : vector<1x8xf32>
    %116 = vector.broadcast %108 : vector<1x8xf32> to vector<128x8xf32>
    %117 = arith.subf %102, %116 : vector<128x8xf32>
    %cst_125 = arith.constant 9.99999974E-6 : f32
    %118 = vector.broadcast %cst_125 : f32 to vector<1x8xf32>
    %119 = arith.addf %115, %118 : vector<1x8xf32>
    %120 = math.rsqrt %119 : vector<1x8xf32>
    %121 = vector.broadcast %120 : vector<1x8xf32> to vector<128x8xf32>
    %122 = arith.mulf %117, %121 : vector<128x8xf32>
    %123 = vector.broadcast %103 : vector<1x8xf32> to vector<128x8xf32>
    %124 = arith.mulf %122, %123 : vector<128x8xf32>
    %125 = vector.broadcast %104 : vector<1x8xf32> to vector<128x8xf32>
    %126 = arith.addf %124, %125 : vector<128x8xf32>
    %127 = arith.addf %99, %126 : vector<128x8xf32>
    %cst_126 = arith.constant 0.000000e+00 : f32
    %128 = vector.broadcast %cst_126 : f32 to vector<128x8xf32>
    %129 = arith.maximumf %127, %128 : vector<128x8xf32>
    %c0_127 = arith.constant 0 : index
    %c0_128 = arith.constant 0 : index
    %130 = vector.load %arg13[%c0_127, %c0_128] : memref<128x8xf32, #tpu.memory_space<vmem>>, vector<128x8xf32>
    tpu.vector_store %arg13[%c0_127, %c0_128], %129 {strides = array<i32>} : memref<128x8xf32, #tpu.memory_space<vmem>>, vector<128x8xf32>,
    return
  }
}

</mosaic_0001>

<llo_original>
// kernel: tpu_custom_call.1
$region0: #{tpu_custom_call.1}
  #allocation0 [shape = 'u32[]', space=smem, size = 0x4, offset = 0x4, fixed_abs, tag = 'smem constant byte address 0x4 - core index']
  #allocation1 [shape = 'u32[144,128]{1,0:T(1,128)}', space=vmem, size = 0x12000, scoped, tag = 'internal scratch']
  #allocation2 [shape = 'f32[2,10,10,8]{3,2,1,0:T(8,128)}', space=vmem, size = 0x28000, scoped, tag = 'scratch operand']
  %s0 = inlined_call_operand.vmem [shape: f32[2,10,10,4], index: 0, kind: input, shape index: {}]
  %s1 = inlined_call_operand.vmem [shape: f32[2,10,10,4], index: 1, kind: input, shape index: {}]
  %s2 = inlined_call_operand.vmem [shape: f32[2,10,10,4], index: 2, kind: input, shape index: {}]
  %s3 = inlined_call_operand.vmem [shape: f32[2,10,10,4], index: 3, kind: input, shape index: {}]
  %s4 = inlined_call_operand.vmem [shape: f32[36,8], index: 4, kind: input, shape index: {}]
  %s5 = inlined_call_operand.vmem [shape: f32[1,8], index: 5, kind: input, shape index: {}]
  %s6 = inlined_call_operand.vmem [shape: f32[1,8], index: 6, kind: input, shape index: {}]
  %s7 = inlined_call_operand.vmem [shape: f32[72,8], index: 7, kind: input, shape index: {}]
  %s8 = inlined_call_operand.vmem [shape: f32[1,8], index: 8, kind: input, shape index: {}]
  %s9 = inlined_call_operand.vmem [shape: f32[1,8], index: 9, kind: input, shape index: {}]
  %s10 = inlined_call_operand.vmem [shape: f32[4,8], index: 10, kind: input, shape index: {}]
  %s11 = inlined_call_operand.vmem [shape: f32[1,8], index: 11, kind: input, shape index: {}]
  %s12 = inlined_call_operand.vmem [shape: f32[1,8], index: 12, kind: input, shape index: {}]
  %s13 = inlined_call_operand.vmem [shape: f32[128,8], index: 13, kind: output, shape index: {}]
  %s14 = sld [smem:[#allocation0]]
  $region62: #{tpu_custom_call.1} parent=0
    _
  %s16 = ssub.s32 1, %s14
  %s17 = scalar_select 0, %s16, %s14
  // Predicated region
  $region2: #{tpu_custom_call.1} parent=0 // pred_check
    _
  $region3: #{tpu_custom_call.1} parent=0 // pred_check_branch
    %19 = sbr.rel (0) target = $region5
  $region4: #{tpu_custom_call.1} parent=0 // pred_region
    _
  $region5: #{tpu_custom_call.1} parent=0 // pred_fallthru
    _
  // Predicated region
  $region6: #{tpu_custom_call.1} parent=0 // pred_check
    _
  $region7: #{tpu_custom_call.1} parent=0 // pred_check_branch
    %21 = sbr.rel (0) target = $region9
  $region8: #{tpu_custom_call.1} parent=0 // pred_region
    _
  $region9: #{tpu_custom_call.1} parent=0 // pred_fallthru
    _
  // Predicated region
  $region10: #{tpu_custom_call.1} parent=0 // pred_check
    _
  $region11: #{tpu_custom_call.1} parent=0 // pred_check_branch
    %23 = sbr.rel (0) target = $region13
  $region12: #{tpu_custom_call.1} parent=0 // pred_region
    _
  $region13: #{tpu_custom_call.1} parent=0 // pred_fallthru
    _
  // Predicated region
  $region14: #{tpu_custom_call.1} parent=0 // pred_check
    _
  $region15: #{tpu_custom_call.1} parent=0 // pred_check_branch
    %25 = sbr.rel (0) target = $region17
  $region16: #{tpu_custom_call.1} parent=0 // pred_region
    _
  $region17: #{tpu_custom_call.1} parent=0 // pred_fallthru
    _
  // Predicated region
  $region18: #{tpu_custom_call.1} parent=0 // pred_check
    _
  $region19: #{tpu_custom_call.1} parent=0 // pred_check_branch
    %27 = sbr.rel (0) target = $region21
  $region20: #{tpu_custom_call.1} parent=0 // pred_region
    _
  $region21: #{tpu_custom_call.1} parent=0 // pred_fallthru
    _
  // Predicated region
  $region22: #{tpu_custom_call.1} parent=0 // pred_check
    _
  $region23: #{tpu_custom_call.1} parent=0 // pred_check_branch
    %29 = sbr.rel (0) target = $region25
  $region24: #{tpu_custom_call.1} parent=0 // pred_region
    _
  $region25: #{tpu_custom_call.1} parent=0 // pred_fallthru
    _
  // Predicated region
  $region26: #{tpu_custom_call.1} parent=0 // pred_check
    _
  $region27: #{tpu_custom_call.1} parent=0 // pred_check_branch
    %31 = sbr.rel (0) target = $region29
  $region28: #{tpu_custom_call.1} parent=0 // pred_region
    _
  $region29: #{tpu_custom_call.1} parent=0 // pred_fallthru
    _
  // Predicated region
  $region30: #{tpu_custom_call.1} parent=0 // pred_check
    _
  $region31: #{tpu_custom_call.1} parent=0 // pred_check_branch
    %33 = sbr.rel (0) target = $region33
  $region32: #{tpu_custom_call.1} parent=0 // pred_region
    _
  $region33: #{tpu_custom_call.1} parent=0 // pred_fallthru
    _
  // Predicated region
  $region34: #{tpu_custom_call.1} parent=0 // pred_check
    _
  $region35: #{tpu_custom_call.1} parent=0 // pred_check_branch
    %35 = sbr.rel (0) target = $region37
  $region36: #{tpu_custom_call.1} parent=0 // pred_region
    _
  $region37: #{tpu_custom_call.1} parent=0 // pred_fallthru
    _
  // Predicated region
  $region38: #{tpu_custom_call.1} parent=0 // pred_check
    _
  $region39: #{tpu_custom_call.1} parent=0 // pred_check_branch
    %37 = sbr.rel (0) target = $region41
  $region40: #{tpu_custom_call.1} parent=0 // pred_region
    _
  $region41: #{tpu_custom_call.1} parent=0 // pred_fallthru
    _
  // Predicated region
  $region42: #{tpu_custom_call.1} parent=0 // pred_check
    _
  $region43: #{tpu_custom_call.1} parent=0 // pred_check_branch
    %39 = sbr.rel (0) target = $region45
  $region44: #{tpu_custom_call.1} parent=0 // pred_region
    _
  $region45: #{tpu_custom_call.1} parent=0 // pred_fallthru
    _
  // Predicated region
  $region46: #{tpu_custom_call.1} parent=0 // pred_check
    _
  $region47: #{tpu_custom_call.1} parent=0 // pred_check_branch
    %41 = sbr.rel (0) target = $region49
  $region48: #{tpu_custom_call.1} parent=0 // pred_region
    _
  $region49: #{tpu_custom_call.1} parent=0 // pred_fallthru
    _
  // Predicated region
  $region50: #{tpu_custom_call.1} parent=0 // pred_check
    _
  $region51: #{tpu_custom_call.1} parent=0 // pred_check_branch
    %43 = sbr.rel (0) target = $region53
  $region52: #{tpu_custom_call.1} parent=0 // pred_region
    _
  $region53: #{tpu_custom_call.1} parent=0 // pred_fallthru
    _
  %v44 = vld [vmem:[%s0] sm:$0xff]
  %v45 = vld [vmem:[%s0 + $0x10] sm:$0xff]
  %v46 = vld [vmem:[%s0 + $0x20] sm:$0xff]
  %v47 = vld [vmem:[%s0 + $0x30] sm:$0xff]
  %v48 = vld [vmem:[%s0 + $0x40] sm:$0xff]
  %v49 = vld [vmem:[%s0 + $0x50] sm:$0xff]
  %v50 = vld [vmem:[%s0 + $0x60] sm:$0xff]
  %v51 = vld [vmem:[%s0 + $0x70] sm:$0xff]
  %v52 = vld [vmem:[%s0 + $0xa0] sm:$0xff]
  %v53 = vld [vmem:[%s0 + $0xb0] sm:$0xff]
  %v54 = vld [vmem:[%s0 + $0xc0] sm:$0xff]
  %v55 = vld [vmem:[%s0 + $0xd0] sm:$0xff]
  %v56 = vld [vmem:[%s0 + $0xe0] sm:$0xff]
  %v57 = vld [vmem:[%s0 + $0xf0] sm:$0xff]
  %v58 = vld [vmem:[%s0 + $0x100] sm:$0xff]
  %v59 = vld [vmem:[%s0 + $0x110] sm:$0xff]
  %v60 = vld [vmem:[%s1] sm:$0xff]
  %v61 = vld [vmem:[%s1 + $0x10] sm:$0xff]
  %v62 = vld [vmem:[%s1 + $0x20] sm:$0xff]
  %v63 = vld [vmem:[%s1 + $0x30] sm:$0xff]
  %v64 = vld [vmem:[%s1 + $0x40] sm:$0xff]
  %v65 = vld [vmem:[%s1 + $0x50] sm:$0xff]
  %v66 = vld [vmem:[%s1 + $0x60] sm:$0xff]
  %v67 = vld [vmem:[%s1 + $0x70] sm:$0xff]
  %v68 = vld [vmem:[%s1 + $0xa0] sm:$0xff]
  %v69 = vld [vmem:[%s1 + $0xb0] sm:$0xff]
  %v70 = vld [vmem:[%s1 + $0xc0] sm:$0xff]
  %v71 = vld [vmem:[%s1 + $0xd0] sm:$0xff]
  %v72 = vld [vmem:[%s1 + $0xe0] sm:$0xff]
  %v73 = vld [vmem:[%s1 + $0xf0] sm:$0xff]
  %v74 = vld [vmem:[%s1 + $0x100] sm:$0xff]
  %v75 = vld [vmem:[%s1 + $0x110] sm:$0xff]
  %v76 = vld [vmem:[%s0 + $0x1] sm:$0xff]
  %v77 = vld [vmem:[%s0 + $0x11] sm:$0xff]
  %v78 = vld [vmem:[%s0 + $0x21] sm:$0xff]
  %v79 = vld [vmem:[%s0 + $0x31] sm:$0xff]
  %v80 = vld [vmem:[%s0 + $0x41] sm:$0xff]
  %v81 = vld [vmem:[%s0 + $0x51] sm:$0xff]
  %v82 = vld [vmem:[%s0 + $0x61] sm:$0xff]
  %v83 = vld [vmem:[%s0 + $0x71] sm:$0xff]
  %v84 = vld [vmem:[%s0 + $0xa1] sm:$0xff]
  %v85 = vld [vmem:[%s0 + $0xb1] sm:$0xff]
  %v86 = vld [vmem:[%s0 + $0xc1] sm:$0xff]
  %v87 = vld [vmem:[%s0 + $0xd1] sm:$0xff]
  %v88 = vld [vmem:[%s0 + $0xe1] sm:$0xff]
  %v89 = vld [vmem:[%s0 + $0xf1] sm:$0xff]
  %v90 = vld [vmem:[%s0 + $0x101] sm:$0xff]
  %v91 = vld [vmem:[%s0 + $0x111] sm:$0xff]
  %v92 = vld [vmem:[%s2] sm:$0xff]
  %v93 = vld [vmem:[%s2 + $0x10] sm:$0xff]
  %v94 = vld [vmem:[%s2 + $0x20] sm:$0xff]
  %v95 = vld [vmem:[%s2 + $0x30] sm:$0xff]
  %v96 = vld [vmem:[%s2 + $0x40] sm:$0xff]
  %v97 = vld [vmem:[%s2 + $0x50] sm:$0xff]
  %v98 = vld [vmem:[%s2 + $0x60] sm:$0xff]
  %v99 = vld [vmem:[%s2 + $0x70] sm:$0xff]
  %v100 = vld [vmem:[%s2 + $0xa0] sm:$0xff]
  %v101 = vld [vmem:[%s2 + $0xb0] sm:$0xff]
  %v102 = vld [vmem:[%s2 + $0xc0] sm:$0xff]
  %v103 = vld [vmem:[%s2 + $0xd0] sm:$0xff]
  %v104 = vld [vmem:[%s2 + $0xe0] sm:$0xff]
  %v105 = vld [vmem:[%s2 + $0xf0] sm:$0xff]
  %v106 = vld [vmem:[%s2 + $0x100] sm:$0xff]
  %v107 = vld [vmem:[%s2 + $0x110] sm:$0xff]
  %v108 = vld [vmem:[%s3] sm:$0xff]
  %v109 = vld [vmem:[%s3 + $0x10] sm:$0xff]
  %v110 = vld [vmem:[%s3 + $0x20] sm:$0xff]
  %v111 = vld [vmem:[%s3 + $0x30] sm:$0xff]
  %v112 = vld [vmem:[%s3 + $0x40] sm:$0xff]
  %v113 = vld [vmem:[%s3 + $0x50] sm:$0xff]
  %v114 = vld [vmem:[%s3 + $0x60] sm:$0xff]
  %v115 = vld [vmem:[%s3 + $0x70] sm:$0xff]
  %v116 = vld [vmem:[%s3 + $0xa0] sm:$0xff]
  %v117 = vld [vmem:[%s3 + $0xb0] sm:$0xff]
  %v118 = vld [vmem:[%s3 + $0xc0] sm:$0xff]
  %v119 = vld [vmem:[%s3 + $0xd0] sm:$0xff]
  %v120 = vld [vmem:[%s3 + $0xe0] sm:$0xff]
  %v121 = vld [vmem:[%s3 + $0xf0] sm:$0xff]
  %v122 = vld [vmem:[%s3 + $0x100] sm:$0xff]
  %v123 = vld [vmem:[%s3 + $0x110] sm:$0xff]
  %v124 = vld [vmem:[%s2 + $0x1] sm:$0xff]
  %v125 = vld [vmem:[%s2 + $0x11] sm:$0xff]
  %v126 = vld [vmem:[%s2 + $0x21] sm:$0xff]
  %v127 = vld [vmem:[%s2 + $0x31] sm:$0xff]
  %v128 = vld [vmem:[%s2 + $0x41] sm:$0xff]
  %v129 = vld [vmem:[%s2 + $0x51] sm:$0xff]
  %v130 = vld [vmem:[%s2 + $0x61] sm:$0xff]
  %v131 = vld [vmem:[%s2 + $0x71] sm:$0xff]
  %v132 = vld [vmem:[%s2 + $0xa1] sm:$0xff]
  %v133 = vld [vmem:[%s2 + $0xb1] sm:$0xff]
  %v134 = vld [vmem:[%s2 + $0xc1] sm:$0xff]
  %v135 = vld [vmem:[%s2 + $0xd1] sm:$0xff]
  %v136 = vld [vmem:[%s2 + $0xe1] sm:$0xff]
  %v137 = vld [vmem:[%s2 + $0xf1] sm:$0xff]
  %v138 = vld [vmem:[%s2 + $0x101] sm:$0xff]
  %v139 = vld [vmem:[%s2 + $0x111] sm:$0xff]
  %s140 = scalar_lea.vmem %s0, 16
  %v141 = vld [vmem:[%s140] sm:$0xff]
  %v142 = vld [vmem:[%s140 + $0x10] sm:$0xff]
  %v143 = vld [vmem:[%s140 + $0x20] sm:$0xff]
  %v144 = vld [vmem:[%s140 + $0x30] sm:$0xff]
  %v145 = vld [vmem:[%s140 + $0x40] sm:$0xff]
  %v146 = vld [vmem:[%s140 + $0x50] sm:$0xff]
  %v147 = vld [vmem:[%s140 + $0x60] sm:$0xff]
  %v148 = vld [vmem:[%s140 + $0x70] sm:$0xff]
  %v149 = vld [vmem:[%s140 + $0xa0] sm:$0xff]
  %v150 = vld [vmem:[%s140 + $0xb0] sm:$0xff]
  %v151 = vld [vmem:[%s140 + $0xc0] sm:$0xff]
  %v152 = vld [vmem:[%s140 + $0xd0] sm:$0xff]
  %v153 = vld [vmem:[%s140 + $0xe0] sm:$0xff]
  %v154 = vld [vmem:[%s140 + $0xf0] sm:$0xff]
  %v155 = vld [vmem:[%s140 + $0x100] sm:$0xff]
  %v156 = vld [vmem:[%s140 + $0x110] sm:$0xff]
  %s157 = scalar_lea.vmem %s1, 16
  %v158 = vld [vmem:[%s157] sm:$0xff]
  %v159 = vld [vmem:[%s157 + $0x10] sm:$0xff]
  %v160 = vld [vmem:[%s157 + $0x20] sm:$0xff]
  %v161 = vld [vmem:[%s157 + $0x30] sm:$0xff]
  %v162 = vld [vmem:[%s157 + $0x40] sm:$0xff]
  %v163 = vld [vmem:[%s157 + $0x50] sm:$0xff]
  %v164 = vld [vmem:[%s157 + $0x60] sm:$0xff]
  %v165 = vld [vmem:[%s157 + $0x70] sm:$0xff]
  %v166 = vld [vmem:[%s157 + $0xa0] sm:$0xff]
  %v167 = vld [vmem:[%s157 + $0xb0] sm:$0xff]
  %v168 = vld [vmem:[%s157 + $0xc0] sm:$0xff]
  %v169 = vld [vmem:[%s157 + $0xd0] sm:$0xff]
  %v170 = vld [vmem:[%s157 + $0xe0] sm:$0xff]
  %v171 = vld [vmem:[%s157 + $0xf0] sm:$0xff]
  %v172 = vld [vmem:[%s157 + $0x100] sm:$0xff]
  %v173 = vld [vmem:[%s157 + $0x110] sm:$0xff]
  %v174 = vld [vmem:[%s140 + $0x1] sm:$0xff]
  %v175 = vld [vmem:[%s140 + $0x11] sm:$0xff]
  %v176 = vld [vmem:[%s140 + $0x21] sm:$0xff]
  %v177 = vld [vmem:[%s140 + $0x31] sm:$0xff]
  %v178 = vld [vmem:[%s140 + $0x41] sm:$0xff]
  %v179 = vld [vmem:[%s140 + $0x51] sm:$0xff]
  %v180 = vld [vmem:[%s140 + $0x61] sm:$0xff]
  %v181 = vld [vmem:[%s140 + $0x71] sm:$0xff]
  %v182 = vld [vmem:[%s140 + $0xa1] sm:$0xff]
  %v183 = vld [vmem:[%s140 + $0xb1] sm:$0xff]
  %v184 = vld [vmem:[%s140 + $0xc1] sm:$0xff]
  %v185 = vld [vmem:[%s140 + $0xd1] sm:$0xff]
  %v186 = vld [vmem:[%s140 + $0xe1] sm:$0xff]
  %v187 = vld [vmem:[%s140 + $0xf1] sm:$0xff]
  %v188 = vld [vmem:[%s140 + $0x101] sm:$0xff]
  %v189 = vld [vmem:[%s140 + $0x111] sm:$0xff]
  %206 = vrot.lane.b32.xlu0 %v60, 4
  %v207 = vpop.permute.xlu0 %206
  %208 = vrot.lane.b32.xlu0 %v61, 4
  %v209 = vpop.permute.xlu0 %208
  %210 = vrot.lane.b32.xlu0 %v62, 4
  %v211 = vpop.permute.xlu0 %210
  %212 = vrot.lane.b32.xlu0 %v63, 4
  %v213 = vpop.permute.xlu0 %212
  %214 = vrot.lane.b32.xlu0 %v64, 4
  %v215 = vpop.permute.xlu0 %214
  %216 = vrot.lane.b32.xlu0 %v65, 4
  %v217 = vpop.permute.xlu0 %216
  %218 = vrot.lane.b32.xlu0 %v66, 4
  %v219 = vpop.permute.xlu0 %218
  %220 = vrot.lane.b32.xlu0 %v67, 4
  %v221 = vpop.permute.xlu0 %220
  %222 = vrot.lane.b32.xlu0 %v68, 4
  %v223 = vpop.permute.xlu0 %222
  %224 = vrot.lane.b32.xlu0 %v69, 4
  %v225 = vpop.permute.xlu0 %224
  %226 = vrot.lane.b32.xlu0 %v70, 4
  %v227 = vpop.permute.xlu0 %226
  %228 = vrot.lane.b32.xlu0 %v71, 4
  %v229 = vpop.permute.xlu0 %228
  %230 = vrot.lane.b32.xlu0 %v72, 4
  %v231 = vpop.permute.xlu0 %230
  %232 = vrot.lane.b32.xlu0 %v73, 4
  %v233 = vpop.permute.xlu0 %232
  %234 = vrot.lane.b32.xlu0 %v74, 4
  %v235 = vpop.permute.xlu0 %234
  %236 = vrot.lane.b32.xlu0 %v75, 4
  %v237 = vpop.permute.xlu0 %236
  %270 = vrot.lane.b32.xlu0 %v76, 8
  %v271 = vpop.permute.xlu0 %270
  %272 = vrot.lane.b32.xlu0 %v77, 8
  %v273 = vpop.permute.xlu0 %272
  %274 = vrot.lane.b32.xlu0 %v78, 8
  %v275 = vpop.permute.xlu0 %274
  %276 = vrot.lane.b32.xlu0 %v79, 8
  %v277 = vpop.permute.xlu0 %276
  %278 = vrot.lane.b32.xlu0 %v80, 8
  %v279 = vpop.permute.xlu0 %278
  %280 = vrot.lane.b32.xlu0 %v81, 8
  %v281 = vpop.permute.xlu0 %280
  %282 = vrot.lane.b32.xlu0 %v82, 8
  %v283 = vpop.permute.xlu0 %282
  %284 = vrot.lane.b32.xlu0 %v83, 8
  %v285 = vpop.permute.xlu0 %284
  %286 = vrot.lane.b32.xlu0 %v84, 8
  %v287 = vpop.permute.xlu0 %286
  %288 = vrot.lane.b32.xlu0 %v85, 8
  %v289 = vpop.permute.xlu0 %288
  %290 = vrot.lane.b32.xlu0 %v86, 8
  %v291 = vpop.permute.xlu0 %290
  %292 = vrot.lane.b32.xlu0 %v87, 8
  %v293 = vpop.permute.xlu0 %292
  %294 = vrot.lane.b32.xlu0 %v88, 8
  %v295 = vpop.permute.xlu0 %294
  %296 = vrot.lane.b32.xlu0 %v89, 8
  %v297 = vpop.permute.xlu0 %296
  %298 = vrot.lane.b32.xlu0 %v90, 8
  %v299 = vpop.permute.xlu0 %298
  %300 = vrot.lane.b32.xlu0 %v91, 8
  %v301 = vpop.permute.xlu0 %300
  %334 = vrot.lane.b32.xlu0 %v92, 12
  %v335 = vpop.permute.xlu0 %334
  %336 = vrot.lane.b32.xlu0 %v93, 12
  %v337 = vpop.permute.xlu0 %336
  %338 = vrot.lane.b32.xlu0 %v94, 12
  %v339 = vpop.permute.xlu0 %338
  %340 = vrot.lane.b32.xlu0 %v95, 12
  %v341 = vpop.permute.xlu0 %340
  %342 = vrot.lane.b32.xlu0 %v96, 12
  %v343 = vpop.permute.xlu0 %342
  %344 = vrot.lane.b32.xlu0 %v97, 12
  %v345 = vpop.permute.xlu0 %344
  %346 = vrot.lane.b32.xlu0 %v98, 12
  %v347 = vpop.permute.xlu0 %346
  %348 = vrot.lane.b32.xlu0 %v99, 12
  %v349 = vpop.permute.xlu0 %348
  %350 = vrot.lane.b32.xlu0 %v100, 12
  %v351 = vpop.permute.xlu0 %350
  %352 = vrot.lane.b32.xlu0 %v101, 12
  %v353 = vpop.permute.xlu0 %352
  %354 = vrot.lane.b32.xlu0 %v102, 12
  %v355 = vpop.permute.xlu0 %354
  %356 = vrot.lane.b32.xlu0 %v103, 12
  %v357 = vpop.permute.xlu0 %356
  %358 = vrot.lane.b32.xlu0 %v104, 12
  %v359 = vpop.permute.xlu0 %358
  %360 = vrot.lane.b32.xlu0 %v105, 12
  %v361 = vpop.permute.xlu0 %360
  %362 = vrot.lane.b32.xlu0 %v106, 12
  %v363 = vpop.permute.xlu0 %362
  %364 = vrot.lane.b32.xlu0 %v107, 12
  %v365 = vpop.permute.xlu0 %364
  %398 = vrot.lane.b32.xlu0 %v108, 16
  %v399 = vpop.permute.xlu0 %398
  %400 = vrot.lane.b32.xlu0 %v109, 16
  %v401 = vpop.permute.xlu0 %400
  %402 = vrot.lane.b32.xlu0 %v110, 16
  %v403 = vpop.permute.xlu0 %402
  %404 = vrot.lane.b32.xlu0 %v111, 16
  %v405 = vpop.permute.xlu0 %404
  %406 = vrot.lane.b32.xlu0 %v112, 16
  %v407 = vpop.permute.xlu0 %406
  %408 = vrot.lane.b32.xlu0 %v113, 16
  %v409 = vpop.permute.xlu0 %408
  %410 = vrot.lane.b32.xlu0 %v114, 16
  %v411 = vpop.permute.xlu0 %410
  %412 = vrot.lane.b32.xlu0 %v115, 16
  %v413 = vpop.permute.xlu0 %412
  %414 = vrot.lane.b32.xlu0 %v116, 16
  %v415 = vpop.permute.xlu0 %414
  %416 = vrot.lane.b32.xlu0 %v117, 16
  %v417 = vpop.permute.xlu0 %416
  %418 = vrot.lane.b32.xlu0 %v118, 16
  %v419 = vpop.permute.xlu0 %418
  %420 = vrot.lane.b32.xlu0 %v119, 16
  %v421 = vpop.permute.xlu0 %420
  %422 = vrot.lane.b32.xlu0 %v120, 16
  %v423 = vpop.permute.xlu0 %422
  %424 = vrot.lane.b32.xlu0 %v121, 16
  %v425 = vpop.permute.xlu0 %424
  %426 = vrot.lane.b32.xlu0 %v122, 16
  %v427 = vpop.permute.xlu0 %426
  %428 = vrot.lane.b32.xlu0 %v123, 16
  %v429 = vpop.permute.xlu0 %428
  %462 = vrot.lane.b32.xlu0 %v124, 20
  %v463 = vpop.permute.xlu0 %462
  %464 = vrot.lane.b32.xlu0 %v125, 20
  %v465 = vpop.permute.xlu0 %464
  %466 = vrot.lane.b32.xlu0 %v126, 20
  %v467 = vpop.permute.xlu0 %466
  %468 = vrot.lane.b32.xlu0 %v127, 20
  %v469 = vpop.permute.xlu0 %468
  %470 = vrot.lane.b32.xlu0 %v128, 20
  %v471 = vpop.permute.xlu0 %470
  %472 = vrot.lane.b32.xlu0 %v129, 20
  %v473 = vpop.permute.xlu0 %472
  %474 = vrot.lane.b32.xlu0 %v130, 20
  %v475 = vpop.permute.xlu0 %474
  %476 = vrot.lane.b32.xlu0 %v131, 20
  %v477 = vpop.permute.xlu0 %476
  %478 = vrot.lane.b32.xlu0 %v132, 20
  %v479 = vpop.permute.xlu0 %478
  %480 = vrot.lane.b32.xlu0 %v133, 20
  %v481 = vpop.permute.xlu0 %480
  %482 = vrot.lane.b32.xlu0 %v134, 20
  %v483 = vpop.permute.xlu0 %482
  %484 = vrot.lane.b32.xlu0 %v135, 20
  %v485 = vpop.permute.xlu0 %484
  %486 = vrot.lane.b32.xlu0 %v136, 20
  %v487 = vpop.permute.xlu0 %486
  %488 = vrot.lane.b32.xlu0 %v137, 20
  %v489 = vpop.permute.xlu0 %488
  %490 = vrot.lane.b32.xlu0 %v138, 20
  %v491 = vpop.permute.xlu0 %490
  %492 = vrot.lane.b32.xlu0 %v139, 20
  %v493 = vpop.permute.xlu0 %492
  %526 = vrot.lane.b32.xlu0 %v141, 24
  %v527 = vpop.permute.xlu0 %526
  %528 = vrot.lane.b32.xlu0 %v142, 24
  %v529 = vpop.permute.xlu0 %528
  %530 = vrot.lane.b32.xlu0 %v143, 24
  %v531 = vpop.permute.xlu0 %530
  %532 = vrot.lane.b32.xlu0 %v144, 24
  %v533 = vpop.permute.xlu0 %532
  %534 = vrot.lane.b32.xlu0 %v145, 24
  %v535 = vpop.permute.xlu0 %534
  %536 = vrot.lane.b32.xlu0 %v146, 24
  %v537 = vpop.permute.xlu0 %536
  %538 = vrot.lane.b32.xlu0 %v147, 24
  %v539 = vpop.permute.xlu0 %538
  %540 = vrot.lane.b32.xlu0 %v148, 24
  %v541 = vpop.permute.xlu0 %540
  %542 = vrot.lane.b32.xlu0 %v149, 24
  %v543 = vpop.permute.xlu0 %542
  %544 = vrot.lane.b32.xlu0 %v150, 24
  %v545 = vpop.permute.xlu0 %544
  %546 = vrot.lane.b32.xlu0 %v151, 24
  %v547 = vpop.permute.xlu0 %546
  %548 = vrot.lane.b32.xlu0 %v152, 24
  %v549 = vpop.permute.xlu0 %548
  %550 = vrot.lane.b32.xlu0 %v153, 24
  %v551 = vpop.permute.xlu0 %550
  %552 = vrot.lane.b32.xlu0 %v154, 24
  %v553 = vpop.permute.xlu0 %552
  %554 = vrot.lane.b32.xlu0 %v155, 24
  %v555 = vpop.permute.xlu0 %554
  %556 = vrot.lane.b32.xlu0 %v156, 24
  %v557 = vpop.permute.xlu0 %556
  %590 = vrot.lane.b32.xlu0 %v158, 28
  %v591 = vpop.permute.xlu0 %590
  %592 = vrot.lane.b32.xlu0 %v159, 28
  %v593 = vpop.permute.xlu0 %592
  %594 = vrot.lane.b32.xlu0 %v160, 28
  %v595 = vpop.permute.xlu0 %594
  %596 = vrot.lane.b32.xlu0 %v161, 28
  %v597 = vpop.permute.xlu0 %596
  %598 = vrot.lane.b32.xlu0 %v162, 28
  %v599 = vpop.permute.xlu0 %598
  %600 = vrot.lane.b32.xlu0 %v163, 28
  %v601 = vpop.permute.xlu0 %600
  %602 = vrot.lane.b32.xlu0 %v164, 28
  %v603 = vpop.permute.xlu0 %602
  %604 = vrot.lane.b32.xlu0 %v165, 28
  %v605 = vpop.permute.xlu0 %604
  %606 = vrot.lane.b32.xlu0 %v166, 28
  %v607 = vpop.permute.xlu0 %606
  %608 = vrot.lane.b32.xlu0 %v167, 28
  %v609 = vpop.permute.xlu0 %608
  %610 = vrot.lane.b32.xlu0 %v168, 28
  %v611 = vpop.permute.xlu0 %610
  %612 = vrot.lane.b32.xlu0 %v169, 28
  %v613 = vpop.permute.xlu0 %612
  %614 = vrot.lane.b32.xlu0 %v170, 28
  %v615 = vpop.permute.xlu0 %614
  %616 = vrot.lane.b32.xlu0 %v171, 28
  %v617 = vpop.permute.xlu0 %616
  %618 = vrot.lane.b32.xlu0 %v172, 28
  %v619 = vpop.permute.xlu0 %618
  %620 = vrot.lane.b32.xlu0 %v173, 28
  %v621 = vpop.permute.xlu0 %620
  %654 = vrot.lane.b32.xlu0 %v174, 32
  %v655 = vpop.permute.xlu0 %654
  %656 = vrot.lane.b32.xlu0 %v175, 32
  %v657 = vpop.permute.xlu0 %656
  %658 = vrot.lane.b32.xlu0 %v176, 32
  %v659 = vpop.permute.xlu0 %658
  %660 = vrot.lane.b32.xlu0 %v177, 32
  %v661 = vpop.permute.xlu0 %660
  %662 = vrot.lane.b32.xlu0 %v178, 32
  %v663 = vpop.permute.xlu0 %662
  %664 = vrot.lane.b32.xlu0 %v179, 32
  %v665 = vpop.permute.xlu0 %664
  %666 = vrot.lane.b32.xlu0 %v180, 32
  %v667 = vpop.permute.xlu0 %666
  %668 = vrot.lane.b32.xlu0 %v181, 32
  %v669 = vpop.permute.xlu0 %668
  %670 = vrot.lane.b32.xlu0 %v182, 32
  %v671 = vpop.permute.xlu0 %670
  %672 = vrot.lane.b32.xlu0 %v183, 32
  %v673 = vpop.permute.xlu0 %672
  %674 = vrot.lane.b32.xlu0 %v184, 32
  %v675 = vpop.permute.xlu0 %674
  %676 = vrot.lane.b32.xlu0 %v185, 32
  %v677 = vpop.permute.xlu0 %676
  %678 = vrot.lane.b32.xlu0 %v186, 32
  %v679 = vpop.permute.xlu0 %678
  %680 = vrot.lane.b32.xlu0 %v187, 32
  %v681 = vpop.permute.xlu0 %680
  %682 = vrot.lane.b32.xlu0 %v188, 32
  %v683 = vpop.permute.xlu0 %682
  %684 = vrot.lane.b32.xlu0 %v189, 32
  %v685 = vpop.permute.xlu0 %684
  %vm702 = vcmask 31744
  %v703 = vsel %vm702, %v44, %v207
  %v704 = vsel %vm702, %v45, %v209
  %v705 = vsel %vm702, %v46, %v211
  %v706 = vsel %vm702, %v47, %v213
  %v707 = vsel %vm702, %v48, %v215
  %v708 = vsel %vm702, %v49, %v217
  %v709 = vsel %vm702, %v50, %v219
  %v710 = vsel %vm702, %v51, %v221
  %v711 = vsel %vm702, %v52, %v223
  %v712 = vsel %vm702, %v53, %v225
  %v713 = vsel %vm702, %v54, %v227
  %v714 = vsel %vm702, %v55, %v229
  %v715 = vsel %vm702, %v56, %v231
  %v716 = vsel %vm702, %v57, %v233
  %v717 = vsel %vm702, %v58, %v235
  %v718 = vsel %vm702, %v59, %v237
  %vm719 = vcmask 64512
  %v720 = vsel %vm719, %v703, %v271
  %v721 = vsel %vm719, %v704, %v273
  %v722 = vsel %vm719, %v705, %v275
  %v723 = vsel %vm719, %v706, %v277
  %v724 = vsel %vm719, %v707, %v279
  %v725 = vsel %vm719, %v708, %v281
  %v726 = vsel %vm719, %v709, %v283
  %v727 = vsel %vm719, %v710, %v285
  %v728 = vsel %vm719, %v711, %v287
  %v729 = vsel %vm719, %v712, %v289
  %v730 = vsel %vm719, %v713, %v291
  %v731 = vsel %vm719, %v714, %v293
  %v732 = vsel %vm719, %v715, %v295
  %v733 = vsel %vm719, %v716, %v297
  %v734 = vsel %vm719, %v717, %v299
  %v735 = vsel %vm719, %v718, %v301
  %vm736 = vcmask 97280
  %v737 = vsel %vm736, %v720, %v335
  %v738 = vsel %vm736, %v721, %v337
  %v739 = vsel %vm736, %v722, %v339
  %v740 = vsel %vm736, %v723, %v341
  %v741 = vsel %vm736, %v724, %v343
  %v742 = vsel %vm736, %v725, %v345
  %v743 = vsel %vm736, %v726, %v347
  %v744 = vsel %vm736, %v727, %v349
  %v745 = vsel %vm736, %v728, %v351
  %v746 = vsel %vm736, %v729, %v353
  %v747 = vsel %vm736, %v730, %v355
  %v748 = vsel %vm736, %v731, %v357
  %v749 = vsel %vm736, %v732, %v359
  %v750 = vsel %vm736, %v733, %v361
  %v751 = vsel %vm736, %v734, %v363
  %v752 = vsel %vm736, %v735, %v365
  %vm753 = vcmask 130048
  %v754 = vsel %vm753, %v737, %v399
  %v755 = vsel %vm753, %v738, %v401
  %v756 = vsel %vm753, %v739, %v403
  %v757 = vsel %vm753, %v740, %v405
  %v758 = vsel %vm753, %v741, %v407
  %v759 = vsel %vm753, %v742, %v409
  %v760 = vsel %vm753, %v743, %v411
  %v761 = vsel %vm753, %v744, %v413
  %v762 = vsel %vm753, %v745, %v415
  %v763 = vsel %vm753, %v746, %v417
  %v764 = vsel %vm753, %v747, %v419
  %v765 = vsel %vm753, %v748, %v421
  %v766 = vsel %vm753, %v749, %v423
  %v767 = vsel %vm753, %v750, %v425
  %v768 = vsel %vm753, %v751, %v427
  %v769 = vsel %vm753, %v752, %v429
  %vm770 = vcmask 162816
  %v771 = vsel %vm770, %v754, %v463
  %v772 = vsel %vm770, %v755, %v465
  %v773 = vsel %vm770, %v756, %v467
  %v774 = vsel %vm770, %v757, %v469
  %v775 = vsel %vm770, %v758, %v471
  %v776 = vsel %vm770, %v759, %v473
  %v777 = vsel %vm770, %v760, %v475
  %v778 = vsel %vm770, %v761, %v477
  %v779 = vsel %vm770, %v762, %v479
  %v780 = vsel %vm770, %v763, %v481
  %v781 = vsel %vm770, %v764, %v483
  %v782 = vsel %vm770, %v765, %v485
  %v783 = vsel %vm770, %v766, %v487
  %v784 = vsel %vm770, %v767, %v489
  %v785 = vsel %vm770, %v768, %v491
  %v786 = vsel %vm770, %v769, %v493
  %vm787 = vcmask 195584
  %v788 = vsel %vm787, %v771, %v527
  %v789 = vsel %vm787, %v772, %v529
  %v790 = vsel %vm787, %v773, %v531
  %v791 = vsel %vm787, %v774, %v533
  %v792 = vsel %vm787, %v775, %v535
  %v793 = vsel %vm787, %v776, %v537
  %v794 = vsel %vm787, %v777, %v539
  %v795 = vsel %vm787, %v778, %v541
  %v796 = vsel %vm787, %v779, %v543
  %v797 = vsel %vm787, %v780, %v545
  %v798 = vsel %vm787, %v781, %v547
  %v799 = vsel %vm787, %v782, %v549
  %v800 = vsel %vm787, %v783, %v551
  %v801 = vsel %vm787, %v784, %v553
  %v802 = vsel %vm787, %v785, %v555
  %v803 = vsel %vm787, %v786, %v557
  %vm804 = vcmask 228352
  %v805 = vsel %vm804, %v788, %v591
  %v806 = vsel %vm804, %v789, %v593
  %v807 = vsel %vm804, %v790, %v595
  %v808 = vsel %vm804, %v791, %v597
  %v809 = vsel %vm804, %v792, %v599
  %v810 = vsel %vm804, %v793, %v601
  %v811 = vsel %vm804, %v794, %v603
  %v812 = vsel %vm804, %v795, %v605
  %v813 = vsel %vm804, %v796, %v607
  %v814 = vsel %vm804, %v797, %v609
  %v815 = vsel %vm804, %v798, %v611
  %v816 = vsel %vm804, %v799, %v613
  %v817 = vsel %vm804, %v800, %v615
  %v818 = vsel %vm804, %v801, %v617
  %v819 = vsel %vm804, %v802, %v619
  %v820 = vsel %vm804, %v803, %v621
  %vm821 = vcmask 261120
  %v822 = vsel %vm821, %v805, %v655
  %v823 = vsel %vm821, %v806, %v657
  %v824 = vsel %vm821, %v807, %v659
  %v825 = vsel %vm821, %v808, %v661
  %v826 = vsel %vm821, %v809, %v663
  %v827 = vsel %vm821, %v810, %v665
  %v828 = vsel %vm821, %v811, %v667
  %v829 = vsel %vm821, %v812, %v669
  %v830 = vsel %vm821, %v813, %v671
  %v831 = vsel %vm821, %v814, %v673
  %v832 = vsel %vm821, %v815, %v675
  %v833 = vsel %vm821, %v816, %v677
  %v834 = vsel %vm821, %v817, %v679
  %v835 = vsel %vm821, %v818, %v681
  %v836 = vsel %vm821, %v819, %v683
  %v837 = vsel %vm821, %v820, %v685
  %v838 = vld [vmem:[%s4] sm:$0xff]
  %v839 = vld [vmem:[%s4 + $0x8] sm:$0xff]
  %v840 = vld [vmem:[%s4 + $0x10] sm:$0xff]
  %v841 = vld [vmem:[%s4 + $0x18] sm:$0xff]
  %v842 = vld [vmem:[%s4 + $0x20] sm:$0xf]
  %vm843 = vcmask 293888
  %v845 = vsel %vm843, %v822, 0
  %v848 = vsel %vm843, %v823, 0
  %v851 = vsel %vm843, %v824, 0
  %v854 = vsel %vm843, %v825, 0
  %v857 = vsel %vm843, %v826, 0
  %v860 = vsel %vm843, %v827, 0
  %v863 = vsel %vm843, %v828, 0
  %v866 = vsel %vm843, %v829, 0
  %v869 = vsel %vm843, %v830, 0
  %v872 = vsel %vm843, %v831, 0
  %v875 = vsel %vm843, %v832, 0
  %v878 = vsel %vm843, %v833, 0
  %v881 = vsel %vm843, %v834, 0
  %v884 = vsel %vm843, %v835, 0
  %v887 = vsel %vm843, %v836, 0
  %v890 = vsel %vm843, %v837, 0
  %vm892 = vcmask 1043456
  %v894 = vsel %vm892, %v842, 0
  %896 = vmatprep.subr.mxu0 0.0
  %897 = vmatpush1.msra.mxu0 %v838
  %898 = vmatprep.subr.mxu0 0.0
  %899 = vmatpush1.msra.mxu0 %v839
  %900 = vmatprep.subr.mxu0 0.0
  %901 = vmatpush1.msra.mxu0 %v840
  %902 = vmatprep.subr.mxu0 0.0
  %903 = vmatpush1.msra.mxu0 %v841
  %904 = vmatprep.subr.mxu0 0.0
  %905 = vmatpush1.msra.mxu0 %v894
  %906 = vmatprep.subr.mxu0 0.0
  %907 = vmatpush1.msra.mxu0 0.0
  %908 = vmatprep.subr.mxu0 0.0
  %909 = vmatpush1.msra.mxu0 0.0
  %910 = vmatprep.subr.mxu0 0.0
  %911 = vmatpush1.msra.mxu0 0.0
  %912 = vmatprep.subr.mxu0 0.0
  %913 = vmatpush1.msra.mxu0 0.0
  %914 = vmatprep.subr.mxu0 0.0
  %915 = vmatpush1.msra.mxu0 0.0
  %916 = vmatprep.subr.mxu0 0.0
  %917 = vmatpush1.msra.mxu0 0.0
  %918 = vmatprep.subr.mxu0 0.0
  %919 = vmatpush1.msra.mxu0 0.0
  %920 = vmatprep.subr.mxu0 0.0
  %921 = vmatpush1.msra.mxu0 0.0
  %922 = vmatprep.subr.mxu0 0.0
  %923 = vmatpush1.msra.mxu0 0.0
  %924 = vmatprep.subr.mxu0 0.0
  %925 = vmatpush1.msra.mxu0 0.0
  %926 = vmatprep.subr.mxu0 0.0
  %927 = vmatpush1.msra.mxu0 0.0
  %928 = vmatprep.subr.mxu0 0.0
  %929 = vmatpush1.msra.mxu0 0.0
  %930 = vmatprep.subr.mxu0 0.0
  %931 = vmatpush1.msra.mxu0 0.0
  %932 = vmatprep.subr.mxu0 0.0
  %933 = vmatpush1.msra.mxu0 0.0
  %934 = vmatprep.subr.mxu0 0.0
  %935 = vmatpush1.msra.mxu0 0.0
  %936 = vmatprep.subr.mxu0 0.0
  %937 = vmatpush1.msra.mxu0 0.0
  %938 = vmatprep.subr.mxu0 0.0
  %939 = vmatpush1.msra.mxu0 0.0
  %940 = vmatprep.subr.mxu0 0.0
  %941 = vmatpush1.msra.mxu0 0.0
  %942 = vmatprep.subr.mxu0 0.0
  %943 = vmatpush1.msra.mxu0 0.0
  %944 = vmatprep.subr.mxu0 0.0
  %945 = vmatpush1.msra.mxu0 0.0
  %946 = vmatprep.subr.mxu0 0.0
  %947 = vmatpush1.msra.mxu0 0.0
  %948 = vmatprep.subr.mxu0 0.0
  %949 = vmatpush1.msra.mxu0 0.0
  %950 = vmatprep.subr.mxu0 0.0
  %951 = vmatpush1.msra.mxu0 0.0
  %952 = vmatprep.subr.mxu0 0.0
  %953 = vmatpush1.msra.mxu0 0.0
  %954 = vmatprep.subr.mxu0 0.0
  %955 = vmatpush1.msra.mxu0 0.0
  %956 = vmatprep.subr.mxu0 0.0
  %957 = vmatpush1.msra.mxu0 0.0
  %958 = vmatprep.subr.mxu0 0.0
  %959 = vmatpush1.msra.mxu0 0.0
  %960 = vmatprep.mubr.f32.mxu0 0.0
  %961 = vmatmul.mubr.f32.gmra.mrb[0].mxu0 %v845
  %v962 = vpop.f32.mrb[0].mxu0
  %v963 = vadd.f32 0.0, %v962
  %v964 = vpop.f32.mrb[0].mxu0
  %965 = vmatprep.mubr.f32.mxu0 0.0
  %966 = vmatmul.mubr.f32.gmra.mrb[0].mxu0 %v848
  %v967 = vpop.f32.mrb[0].mxu0
  %v968 = vadd.f32 0.0, %v967
  %v969 = vpop.f32.mrb[0].mxu0
  %970 = vmatprep.mubr.f32.mxu0 0.0
  %971 = vmatmul.mubr.f32.gmra.mrb[0].mxu0 %v851
  %v972 = vpop.f32.mrb[0].mxu0
  %v973 = vadd.f32 0.0, %v972
  %v974 = vpop.f32.mrb[0].mxu0
  %975 = vmatprep.mubr.f32.mxu0 0.0
  %976 = vmatmul.mubr.f32.gmra.mrb[0].mxu0 %v854
  %v977 = vpop.f32.mrb[0].mxu0
  %v978 = vadd.f32 0.0, %v977
  %v979 = vpop.f32.mrb[0].mxu0
  %980 = vmatprep.mubr.f32.mxu0 0.0
  %981 = vmatmul.mubr.f32.gmra.mrb[0].mxu0 %v857
  %v982 = vpop.f32.mrb[0].mxu0
  %v983 = vadd.f32 0.0, %v982
  %v984 = vpop.f32.mrb[0].mxu0
  %985 = vmatprep.mubr.f32.mxu0 0.0
  %986 = vmatmul.mubr.f32.gmra.mrb[0].mxu0 %v860
  %v987 = vpop.f32.mrb[0].mxu0
  %v988 = vadd.f32 0.0, %v987
  %v989 = vpop.f32.mrb[0].mxu0
  %990 = vmatprep.mubr.f32.mxu0 0.0
  %991 = vmatmul.mubr.f32.gmra.mrb[0].mxu0 %v863
  %v992 = vpop.f32.mrb[0].mxu0
  %v993 = vadd.f32 0.0, %v992
  %v994 = vpop.f32.mrb[0].mxu0
  %995 = vmatprep.mubr.f32.mxu0 0.0
  %996 = vmatmul.mubr.f32.gmra.mrb[0].mxu0 %v866
  %v997 = vpop.f32.mrb[0].mxu0
  %v998 = vadd.f32 0.0, %v997
  %v999 = vpop.f32.mrb[0].mxu0
  %1000 = vmatprep.mubr.f32.mxu0 0.0
  %1001 = vmatmul.mubr.f32.gmra.mrb[0].mxu0 %v869
  %v1002 = vpop.f32.mrb[0].mxu0
  %v1003 = vadd.f32 0.0, %v1002
  %v1004 = vpop.f32.mrb[0].mxu0
  %1005 = vmatprep.mubr.f32.mxu0 0.0
  %1006 = vmatmul.mubr.f32.gmra.mrb[0].mxu0 %v872
  %v1007 = vpop.f32.mrb[0].mxu0
  %v1008 = vadd.f32 0.0, %v1007
  %v1009 = vpop.f32.mrb[0].mxu0
  %1010 = vmatprep.mubr.f32.mxu0 0.0
  %1011 = vmatmul.mubr.f32.gmra.mrb[0].mxu0 %v875
  %v1012 = vpop.f32.mrb[0].mxu0
  %v1013 = vadd.f32 0.0, %v1012
  %v1014 = vpop.f32.mrb[0].mxu0
  %1015 = vmatprep.mubr.f32.mxu0 0.0
  %1016 = vmatmul.mubr.f32.gmra.mrb[0].mxu0 %v878
  %v1017 = vpop.f32.mrb[0].mxu0
  %v1018 = vadd.f32 0.0, %v1017
  %v1019 = vpop.f32.mrb[0].mxu0
  %1020 = vmatprep.mubr.f32.mxu0 0.0
  %1021 = vmatmul.mubr.f32.gmra.mrb[0].mxu0 %v881
  %v1022 = vpop.f32.mrb[0].mxu0
  %v1023 = vadd.f32 0.0, %v1022
  %v1024 = vpop.f32.mrb[0].mxu0
  %1025 = vmatprep.mubr.f32.mxu0 0.0
  %1026 = vmatmul.mubr.f32.gmra.mrb[0].mxu0 %v884
  %v1027 = vpop.f32.mrb[0].mxu0
  %v1028 = vadd.f32 0.0, %v1027
  %v1029 = vpop.f32.mrb[0].mxu0
  %1030 = vmatprep.mubr.f32.mxu0 0.0
  %1031 = vmatmul.mubr.f32.gmra.mrb[0].mxu0 %v887
  %v1032 = vpop.f32.mrb[0].mxu0
  %v1033 = vadd.f32 0.0, %v1032
  %v1034 = vpop.f32.mrb[0].mxu0
  %1035 = vmatprep.mubr.f32.mxu0 0.0
  %1036 = vmatmul.mubr.f32.gmra.mrb[0].mxu0 %v890
  %v1037 = vpop.f32.mrb[0].mxu0
  %v1038 = vadd.f32 0.0, %v1037
  %v1039 = vpop.f32.mrb[0].mxu0
  %1040 = vdwg.mxu0
  %v1041 = vld [vmem:[%s5] sm:$0x1]
  %v1042 = vld [vmem:[%s6] sm:$0x1]
  %v1043 = vsel %vm719, %v963, 0.0
  %v1044 = vsel %vm719, %v968, 0.0
  %v1045 = vadd.f32 %v1043, %v1044
  %v1046 = vsel %vm719, %v973, 0.0
  %v1047 = vadd.f32 %v1045, %v1046
  %v1048 = vsel %vm719, %v978, 0.0
  %v1049 = vadd.f32 %v1047, %v1048
  %v1050 = vsel %vm719, %v983, 0.0
  %v1051 = vadd.f32 %v1049, %v1050
  %v1052 = vsel %vm719, %v988, 0.0
  %v1053 = vadd.f32 %v1051, %v1052
  %v1054 = vsel %vm719, %v993, 0.0
  %v1055 = vadd.f32 %v1053, %v1054
  %v1056 = vsel %vm719, %v998, 0.0
  %v1057 = vadd.f32 %v1055, %v1056
  %v1058 = vsel %vm719, %v1003, 0.0
  %v1059 = vadd.f32 %v1057, %v1058
  %v1060 = vsel %vm719, %v1008, 0.0
  %v1061 = vadd.f32 %v1059, %v1060
  %v1062 = vsel %vm719, %v1013, 0.0
  %v1063 = vadd.f32 %v1061, %v1062
  %v1064 = vsel %vm719, %v1018, 0.0
  %v1065 = vadd.f32 %v1063, %v1064
  %v1066 = vsel %vm719, %v1023, 0.0
  %v1067 = vadd.f32 %v1065, %v1066
  %v1068 = vsel %vm719, %v1028, 0.0
  %v1069 = vadd.f32 %v1067, %v1068
  %v1070 = vsel %vm719, %v1033, 0.0
  %v1071 = vadd.f32 %v1069, %v1070
  %v1072 = vsel %vm719, %v1038, 0.0
  %v1073 = vadd.f32 %v1071, %v1072
  %v1074 = vrot.slane %v1073, 4
  %v1075 = vadd.f32 %v1073, %v1074
  %v1076 = vrot.slane %v1075, 2
  %v1077 = vadd.f32 %v1075, %v1076
  %v1078 = vrot.slane %v1077, 1
  %v1079 = vadd.f32 %v1077, %v1078
  %v1080 = vrcp.pop 128.0
  %v1081 = vmul.f32 %v1079, %v1080
  %v1082 = vsub.f32 %v963, %v1081
  %v1083 = vsub.f32 %v968, %v1081
  %v1084 = vsub.f32 %v973, %v1081
  %v1085 = vsub.f32 %v978, %v1081
  %v1086 = vsub.f32 %v983, %v1081
  %v1087 = vsub.f32 %v988, %v1081
  %v1088 = vsub.f32 %v993, %v1081
  %v1089 = vsub.f32 %v998, %v1081
  %v1090 = vsub.f32 %v1003, %v1081
  %v1091 = vsub.f32 %v1008, %v1081
  %v1092 = vsub.f32 %v1013, %v1081
  %v1093 = vsub.f32 %v1018, %v1081
  %v1094 = vsub.f32 %v1023, %v1081
  %v1095 = vsub.f32 %v1028, %v1081
  %v1096 = vsub.f32 %v1033, %v1081
  %v1097 = vsub.f32 %v1038, %v1081
  %v1098 = vmul.f32 %v1082, %v1082
  %v1099 = vmul.f32 %v1083, %v1083
  %v1100 = vmul.f32 %v1084, %v1084
  %v1101 = vmul.f32 %v1085, %v1085
  %v1102 = vmul.f32 %v1086, %v1086
  %v1103 = vmul.f32 %v1087, %v1087
  %v1104 = vmul.f32 %v1088, %v1088
  %v1105 = vmul.f32 %v1089, %v1089
  %v1106 = vmul.f32 %v1090, %v1090
  %v1107 = vmul.f32 %v1091, %v1091
  %v1108 = vmul.f32 %v1092, %v1092
  %v1109 = vmul.f32 %v1093, %v1093
  %v1110 = vmul.f32 %v1094, %v1094
  %v1111 = vmul.f32 %v1095, %v1095
  %v1112 = vmul.f32 %v1096, %v1096
  %v1113 = vmul.f32 %v1097, %v1097
  %v1114 = vsel %vm719, %v1098, 0.0
  %v1115 = vsel %vm719, %v1099, 0.0
  %v1116 = vadd.f32 %v1114, %v1115
  %v1117 = vsel %vm719, %v1100, 0.0
  %v1118 = vadd.f32 %v1116, %v1117
  %v1119 = vsel %vm719, %v1101, 0.0
  %v1120 = vadd.f32 %v1118, %v1119
  %v1121 = vsel %vm719, %v1102, 0.0
  %v1122 = vadd.f32 %v1120, %v1121
  %v1123 = vsel %vm719, %v1103, 0.0
  %v1124 = vadd.f32 %v1122, %v1123
  %v1125 = vsel %vm719, %v1104, 0.0
  %v1126 = vadd.f32 %v1124, %v1125
  %v1127 = vsel %vm719, %v1105, 0.0
  %v1128 = vadd.f32 %v1126, %v1127
  %v1129 = vsel %vm719, %v1106, 0.0
  %v1130 = vadd.f32 %v1128, %v1129
  %v1131 = vsel %vm719, %v1107, 0.0
  %v1132 = vadd.f32 %v1130, %v1131
  %v1133 = vsel %vm719, %v1108, 0.0
  %v1134 = vadd.f32 %v1132, %v1133
  %v1135 = vsel %vm719, %v1109, 0.0
  %v1136 = vadd.f32 %v1134, %v1135
  %v1137 = vsel %vm719, %v1110, 0.0
  %v1138 = vadd.f32 %v1136, %v1137
  %v1139 = vsel %vm719, %v1111, 0.0
  %v1140 = vadd.f32 %v1138, %v1139
  %v1141 = vsel %vm719, %v1112, 0.0
  %v1142 = vadd.f32 %v1140, %v1141
  %v1143 = vsel %vm719, %v1113, 0.0
  %v1144 = vadd.f32 %v1142, %v1143
  %v1145 = vrot.slane %v1144, 4
  %v1146 = vadd.f32 %v1144, %v1145
  %v1147 = vrot.slane %v1146, 2
  %v1148 = vadd.f32 %v1146, %v1147
  %v1149 = vrot.slane %v1148, 1
  %v1150 = vadd.f32 %v1148, %v1149
  %v1151 = vmul.f32 %v1150, %v1080
  %v1152 = vadd.f32 %v1151, 1e-05
  %v1153 = vrsqrt.pop %v1152
  %v1154 = vmul.f32 %v1082, %v1153
  %v1155 = vmul.f32 %v1083, %v1153
  %v1156 = vmul.f32 %v1084, %v1153
  %v1157 = vmul.f32 %v1085, %v1153
  %v1158 = vmul.f32 %v1086, %v1153
  %v1159 = vmul.f32 %v1087, %v1153
  %v1160 = vmul.f32 %v1088, %v1153
  %v1161 = vmul.f32 %v1089, %v1153
  %v1162 = vmul.f32 %v1090, %v1153
  %v1163 = vmul.f32 %v1091, %v1153
  %v1164 = vmul.f32 %v1092, %v1153
  %v1165 = vmul.f32 %v1093, %v1153
  %v1166 = vmul.f32 %v1094, %v1153
  %v1167 = vmul.f32 %v1095, %v1153
  %v1168 = vmul.f32 %v1096, %v1153
  %v1169 = vmul.f32 %v1097, %v1153
  %v1171 = vlaneseq
  %v1172 = vshrl.u32 %v1171, 7
  %v1173 = vsub.s32 0, %v1172
  %v1174 = vrot.slane %v1041, %v1173
  %v1176 = vmul.f32 %v1154, %v1174
  %v1177 = vmul.f32 %v1155, %v1174
  %v1178 = vmul.f32 %v1156, %v1174
  %v1179 = vmul.f32 %v1157, %v1174
  %v1180 = vmul.f32 %v1158, %v1174
  %v1181 = vmul.f32 %v1159, %v1174
  %v1182 = vmul.f32 %v1160, %v1174
  %v1183 = vmul.f32 %v1161, %v1174
  %v1184 = vmul.f32 %v1162, %v1174
  %v1185 = vmul.f32 %v1163, %v1174
  %v1186 = vmul.f32 %v1164, %v1174
  %v1187 = vmul.f32 %v1165, %v1174
  %v1188 = vmul.f32 %v1166, %v1174
  %v1189 = vmul.f32 %v1167, %v1174
  %v1190 = vmul.f32 %v1168, %v1174
  %v1191 = vmul.f32 %v1169, %v1174
  %v1193 = vlaneseq
  %v1194 = vshrl.u32 %v1193, 7
  %v1195 = vsub.s32 0, %v1194
  %v1196 = vrot.slane %v1042, %v1195
  %v1198 = vadd.f32 %v1176, %v1196
  %v1199 = vadd.f32 %v1177, %v1196
  %v1200 = vadd.f32 %v1178, %v1196
  %v1201 = vadd.f32 %v1179, %v1196
  %v1202 = vadd.f32 %v1180, %v1196
  %v1203 = vadd.f32 %v1181, %v1196
  %v1204 = vadd.f32 %v1182, %v1196
  %v1205 = vadd.f32 %v1183, %v1196
  %v1206 = vadd.f32 %v1184, %v1196
  %v1207 = vadd.f32 %v1185, %v1196
  %v1208 = vadd.f32 %v1186, %v1196
  %v1209 = vadd.f32 %v1187, %v1196
  %v1210 = vadd.f32 %v1188, %v1196
  %v1211 = vadd.f32 %v1189, %v1196
  %v1212 = vadd.f32 %v1190, %v1196
  %v1213 = vadd.f32 %v1191, %v1196
  %v1214 = vmax.f32 %v1198, 0.0
  %v1215 = vmax.f32 %v1199, 0.0
  %v1216 = vmax.f32 %v1200, 0.0
  %v1217 = vmax.f32 %v1201, 0.0
  %v1218 = vmax.f32 %v1202, 0.0
  %v1219 = vmax.f32 %v1203, 0.0
  %v1220 = vmax.f32 %v1204, 0.0
  %v1221 = vmax.f32 %v1205, 0.0
  %v1222 = vmax.f32 %v1206, 0.0
  %v1223 = vmax.f32 %v1207, 0.0
  %v1224 = vmax.f32 %v1208, 0.0
  %v1225 = vmax.f32 %v1209, 0.0
  %v1226 = vmax.f32 %v1210, 0.0
  %v1227 = vmax.f32 %v1211, 0.0
  %v1228 = vmax.f32 %v1212, 0.0
  %v1229 = vmax.f32 %v1213, 0.0
  %1230 = vst.msk [vmem:[#allocation2] sm:$0xff] %vm719, 0.0
  %vm1231 = vcmask 58368
  %1232 = vst.msk [vmem:[#allocation2 + $0x8] sm:$0x3] %vm1231, 0.0
  %1233 = vst.msk [vmem:[#allocation2 + $0xa0] sm:$0xff] %vm719, 0.0
  %1234 = vst.msk [vmem:[#allocation2 + $0xa8] sm:$0x3] %vm1231, 0.0
  %s1235 = scalar_lea.vmem [#allocation2], 144
  %1236 = vst.msk [vmem:[%s1235] sm:$0xff] %vm719, 0.0
  %1237 = vst.msk [vmem:[%s1235 + $0x8] sm:$0x3] %vm1231, 0.0
  %1238 = vst.msk [vmem:[%s1235 + $0xa0] sm:$0xff] %vm719, 0.0
  %1239 = vst.msk [vmem:[%s1235 + $0xa8] sm:$0x3] %vm1231, 0.0
  %s1240 = scalar_lea.vmem [#allocation2], 16
  %vm1241 = vcmask 57344
  %1242 = vst.msk [vmem:[%s1240] sm:$0x1] %vm1241, 0.0
  %1243 = vst.msk [vmem:[%s1240 + $0x10] sm:$0x1] %vm1241, 0.0
  %1244 = vst.msk [vmem:[%s1240 + $0x20] sm:$0x1] %vm1241, 0.0
  %1245 = vst.msk [vmem:[%s1240 + $0x30] sm:$0x1] %vm1241, 0.0
  %1246 = vst.msk [vmem:[%s1240 + $0x40] sm:$0x1] %vm1241, 0.0
  %1247 = vst.msk [vmem:[%s1240 + $0x50] sm:$0x1] %vm1241, 0.0
  %1248 = vst.msk [vmem:[%s1240 + $0x60] sm:$0x1] %vm1241, 0.0
  %1249 = vst.msk [vmem:[%s1240 + $0x70] sm:$0x1] %vm1241, 0.0
  %1250 = vst.msk [vmem:[%s1240 + $0xa0] sm:$0x1] %vm1241, 0.0
  %1251 = vst.msk [vmem:[%s1240 + $0xb0] sm:$0x1] %vm1241, 0.0
  %1252 = vst.msk [vmem:[%s1240 + $0xc0] sm:$0x1] %vm1241, 0.0
  %1253 = vst.msk [vmem:[%s1240 + $0xd0] sm:$0x1] %vm1241, 0.0
  %1254 = vst.msk [vmem:[%s1240 + $0xe0] sm:$0x1] %vm1241, 0.0
  %1255 = vst.msk [vmem:[%s1240 + $0xf0] sm:$0x1] %vm1241, 0.0
  %1256 = vst.msk [vmem:[%s1240 + $0x100] sm:$0x1] %vm1241, 0.0
  %1257 = vst.msk [vmem:[%s1240 + $0x110] sm:$0x1] %vm1241, 0.0
  %1258 = vst.msk [vmem:[%s1240 + $0x9] sm:$0x1] %vm1241, 0.0
  %1259 = vst.msk [vmem:[%s1240 + $0x19] sm:$0x1] %vm1241, 0.0
  %1260 = vst.msk [vmem:[%s1240 + $0x29] sm:$0x1] %vm1241, 0.0
  %1261 = vst.msk [vmem:[%s1240 + $0x39] sm:$0x1] %vm1241, 0.0
  %1262 = vst.msk [vmem:[%s1240 + $0x49] sm:$0x1] %vm1241, 0.0
  %1263 = vst.msk [vmem:[%s1240 + $0x59] sm:$0x1] %vm1241, 0.0
  %1264 = vst.msk [vmem:[%s1240 + $0x69] sm:$0x1] %vm1241, 0.0
  %1265 = vst.msk [vmem:[%s1240 + $0x79] sm:$0x1] %vm1241, 0.0
  %1266 = vst.msk [vmem:[%s1240 + $0xa9] sm:$0x1] %vm1241, 0.0
  %1267 = vst.msk [vmem:[%s1240 + $0xb9] sm:$0x1] %vm1241, 0.0
  %1268 = vst.msk [vmem:[%s1240 + $0xc9] sm:$0x1] %vm1241, 0.0
  %1269 = vst.msk [vmem:[%s1240 + $0xd9] sm:$0x1] %vm1241, 0.0
  %1270 = vst.msk [vmem:[%s1240 + $0xe9] sm:$0x1] %vm1241, 0.0
  %1271 = vst.msk [vmem:[%s1240 + $0xf9] sm:$0x1] %vm1241, 0.0
  %1272 = vst.msk [vmem:[%s1240 + $0x109] sm:$0x1] %vm1241, 0.0
  %1273 = vst.msk [vmem:[%s1240 + $0x119] sm:$0x1] %vm1241, 0.0
  %1274 = vst.msk [vmem:[%s1240 + $0x1] sm:$0xff] %vm719, %v1214
  %1275 = vst.msk [vmem:[%s1240 + $0x11] sm:$0xff] %vm719, %v1215
  %1276 = vst.msk [vmem:[%s1240 + $0x21] sm:$0xff] %vm719, %v1216
  %1277 = vst.msk [vmem:[%s1240 + $0x31] sm:$0xff] %vm719, %v1217
  %1278 = vst.msk [vmem:[%s1240 + $0x41] sm:$0xff] %vm719, %v1218
  %1279 = vst.msk [vmem:[%s1240 + $0x51] sm:$0xff] %vm719, %v1219
  %1280 = vst.msk [vmem:[%s1240 + $0x61] sm:$0xff] %vm719, %v1220
  %1281 = vst.msk [vmem:[%s1240 + $0x71] sm:$0xff] %vm719, %v1221
  %1282 = vst.msk [vmem:[%s1240 + $0xa1] sm:$0xff] %vm719, %v1222
  %1283 = vst.msk [vmem:[%s1240 + $0xb1] sm:$0xff] %vm719, %v1223
  %1284 = vst.msk [vmem:[%s1240 + $0xc1] sm:$0xff] %vm719, %v1224
  %1285 = vst.msk [vmem:[%s1240 + $0xd1] sm:$0xff] %vm719, %v1225
  %1286 = vst.msk [vmem:[%s1240 + $0xe1] sm:$0xff] %vm719, %v1226
  %1287 = vst.msk [vmem:[%s1240 + $0xf1] sm:$0xff] %vm719, %v1227
  %1288 = vst.msk [vmem:[%s1240 + $0x101] sm:$0xff] %vm719, %v1228
  %1289 = vst.msk [vmem:[%s1240 + $0x111] sm:$0xff] %vm719, %v1229
  %v1290 = vld [vmem:[#allocation2] sm:$0xff]
  %v1291 = vld [vmem:[#allocation2 + $0x10] sm:$0xff]
  %v1292 = vld [vmem:[#allocation2 + $0x20] sm:$0xff]
  %v1293 = vld [vmem:[#allocation2 + $0x30] sm:$0xff]
  %v1294 = vld [vmem:[#allocation2 + $0x40] sm:$0xff]
  %v1295 = vld [vmem:[#allocation2 + $0x50] sm:$0xff]
  %v1296 = vld [vmem:[#allocation2 + $0x60] sm:$0xff]
  %v1297 = vld [vmem:[#allocation2 + $0x70] sm:$0xff]
  %v1298 = vld [vmem:[#allocation2 + $0xa0] sm:$0xff]
  %v1299 = vld [vmem:[#allocation2 + $0xb0] sm:$0xff]
  %v1300 = vld [vmem:[#allocation2 + $0xc0] sm:$0xff]
  %v1301 = vld [vmem:[#allocation2 + $0xd0] sm:$0xff]
  %v1302 = vld [vmem:[#allocation2 + $0xe0] sm:$0xff]
  %v1303 = vld [vmem:[#allocation2 + $0xf0] sm:$0xff]
  %v1304 = vld [vmem:[#allocation2 + $0x100] sm:$0xff]
  %v1305 = vld [vmem:[#allocation2 + $0x110] sm:$0xff]
  %v1306 = vld [vmem:[#allocation2 + $0x1] sm:$0xff]
  %v1307 = vld [vmem:[#allocation2 + $0x11] sm:$0xff]
  %v1308 = vld [vmem:[#allocation2 + $0x21] sm:$0xff]
  %v1309 = vld [vmem:[#allocation2 + $0x31] sm:$0xff]
  %v1310 = vld [vmem:[#allocation2 + $0x41] sm:$0xff]
  %v1311 = vld [vmem:[#allocation2 + $0x51] sm:$0xff]
  %v1312 = vld [vmem:[#allocation2 + $0x61] sm:$0xff]
  %v1313 = vld [vmem:[#allocation2 + $0x71] sm:$0xff]
  %v1314 = vld [vmem:[#allocation2 + $0xa1] sm:$0xff]
  %v1315 = vld [vmem:[#allocation2 + $0xb1] sm:$0xff]
  %v1316 = vld [vmem:[#allocation2 + $0xc1] sm:$0xff]
  %v1317 = vld [vmem:[#allocation2 + $0xd1] sm:$0xff]
  %v1318 = vld [vmem:[#allocation2 + $0xe1] sm:$0xff]
  %v1319 = vld [vmem:[#allocation2 + $0xf1] sm:$0xff]
  %v1320 = vld [vmem:[#allocation2 + $0x101] sm:$0xff]
  %v1321 = vld [vmem:[#allocation2 + $0x111] sm:$0xff]
  %v1322 = vld [vmem:[#allocation2 + $0x2] sm:$0xff]
  %v1323 = vld [vmem:[#allocation2 + $0x12] sm:$0xff]
  %v1324 = vld [vmem:[#allocation2 + $0x22] sm:$0xff]
  %v1325 = vld [vmem:[#allocation2 + $0x32] sm:$0xff]
  %v1326 = vld [vmem:[#allocation2 + $0x42] sm:$0xff]
  %v1327 = vld [vmem:[#allocation2 + $0x52] sm:$0xff]
  %v1328 = vld [vmem:[#allocation2 + $0x62] sm:$0xff]
  %v1329 = vld [vmem:[#allocation2 + $0x72] sm:$0xff]
  %v1330 = vld [vmem:[#allocation2 + $0xa2] sm:$0xff]
  %v1331 = vld [vmem:[#allocation2 + $0xb2] sm:$0xff]
  %v1332 = vld [vmem:[#allocation2 + $0xc2] sm:$0xff]
  %v1333 = vld [vmem:[#allocation2 + $0xd2] sm:$0xff]
  %v1334 = vld [vmem:[#allocation2 + $0xe2] sm:$0xff]
  %v1335 = vld [vmem:[#allocation2 + $0xf2] sm:$0xff]
  %v1336 = vld [vmem:[#allocation2 + $0x102] sm:$0xff]
  %v1337 = vld [vmem:[#allocation2 + $0x112] sm:$0xff]
  %v1338 = vld [vmem:[%s1240] sm:$0xff]
  %v1339 = vld [vmem:[%s1240 + $0x10] sm:$0xff]
  %v1340 = vld [vmem:[%s1240 + $0x20] sm:$0xff]
  %v1341 = vld [vmem:[%s1240 + $0x30] sm:$0xff]
  %v1342 = vld [vmem:[%s1240 + $0x40] sm:$0xff]
  %v1343 = vld [vmem:[%s1240 + $0x50] sm:$0xff]
  %v1344 = vld [vmem:[%s1240 + $0x60] sm:$0xff]
  %v1345 = vld [vmem:[%s1240 + $0x70] sm:$0xff]
  %v1346 = vld [vmem:[%s1240 + $0xa0] sm:$0xff]
  %v1347 = vld [vmem:[%s1240 + $0xb0] sm:$0xff]
  %v1348 = vld [vmem:[%s1240 + $0xc0] sm:$0xff]
  %v1349 = vld [vmem:[%s1240 + $0xd0] sm:$0xff]
  %v1350 = vld [vmem:[%s1240 + $0xe0] sm:$0xff]
  %v1351 = vld [vmem:[%s1240 + $0xf0] sm:$0xff]
  %v1352 = vld [vmem:[%s1240 + $0x100] sm:$0xff]
  %v1353 = vld [vmem:[%s1240 + $0x110] sm:$0xff]
  %v1354 = vld [vmem:[%s1240 + $0x1] sm:$0xff]
  %v1355 = vld [vmem:[%s1240 + $0x11] sm:$0xff]
  %v1356 = vld [vmem:[%s1240 + $0x21] sm:$0xff]
  %v1357 = vld [vmem:[%s1240 + $0x31] sm:$0xff]
  %v1358 = vld [vmem:[%s1240 + $0x41] sm:$0xff]
  %v1359 = vld [vmem:[%s1240 + $0x51] sm:$0xff]
  %v1360 = vld [vmem:[%s1240 + $0x61] sm:$0xff]
  %v1361 = vld [vmem:[%s1240 + $0x71] sm:$0xff]
  %v1362 = vld [vmem:[%s1240 + $0xa1] sm:$0xff]
  %v1363 = vld [vmem:[%s1240 + $0xb1] sm:$0xff]
  %v1364 = vld [vmem:[%s1240 + $0xc1] sm:$0xff]
  %v1365 = vld [vmem:[%s1240 + $0xd1] sm:$0xff]
  %v1366 = vld [vmem:[%s1240 + $0xe1] sm:$0xff]
  %v1367 = vld [vmem:[%s1240 + $0xf1] sm:$0xff]
  %v1368 = vld [vmem:[%s1240 + $0x101] sm:$0xff]
  %v1369 = vld [vmem:[%s1240 + $0x111] sm:$0xff]
  %v1370 = vld [vmem:[%s1240 + $0x2] sm:$0xff]
  %v1371 = vld [vmem:[%s1240 + $0x12] sm:$0xff]
  %v1372 = vld [vmem:[%s1240 + $0x22] sm:$0xff]
  %v1373 = vld [vmem:[%s1240 + $0x32] sm:$0xff]
  %v1374 = vld [vmem:[%s1240 + $0x42] sm:$0xff]
  %v1375 = vld [vmem:[%s1240 + $0x52] sm:$0xff]
  %v1376 = vld [vmem:[%s1240 + $0x62] sm:$0xff]
  %v1377 = vld [vmem:[%s1240 + $0x72] sm:$0xff]
  %v1378 = vld [vmem:[%s1240 + $0xa2] sm:$0xff]
  %v1379 = vld [vmem:[%s1240 + $0xb2] sm:$0xff]
  %v1380 = vld [vmem:[%s1240 + $0xc2] sm:$0xff]
  %v1381 = vld [vmem:[%s1240 + $0xd2] sm:$0xff]
  %v1382 = vld [vmem:[%s1240 + $0xe2] sm:$0xff]
  %v1383 = vld [vmem:[%s1240 + $0xf2] sm:$0xff]
  %v1384 = vld [vmem:[%s1240 + $0x102] sm:$0xff]
  %v1385 = vld [vmem:[%s1240 + $0x112] sm:$0xff]
  %s1386 = scalar_lea.vmem [#allocation2], 32
  %v1387 = vld [vmem:[%s1386] sm:$0xff]
  %v1388 = vld [vmem:[%s1386 + $0x10] sm:$0xff]
  %v1389 = vld [vmem:[%s1386 + $0x20] sm:$0xff]
  %v1390 = vld [vmem:[%s1386 + $0x30] sm:$0xff]
  %v1391 = vld [vmem:[%s1386 + $0x40] sm:$0xff]
  %v1392 = vld [vmem:[%s1386 + $0x50] sm:$0xff]
  %v1393 = vld [vmem:[%s1386 + $0x60] sm:$0xff]
  %v1394 = vld [vmem:[%s1386 + $0x70] sm:$0xff]
  %v1395 = vld [vmem:[%s1386 + $0xa0] sm:$0xff]
  %v1396 = vld [vmem:[%s1386 + $0xb0] sm:$0xff]
  %v1397 = vld [vmem:[%s1386 + $0xc0] sm:$0xff]
  %v1398 = vld [vmem:[%s1386 + $0xd0] sm:$0xff]
  %v1399 = vld [vmem:[%s1386 + $0xe0] sm:$0xff]
  %v1400 = vld [vmem:[%s1386 + $0xf0] sm:$0xff]
  %v1401 = vld [vmem:[%s1386 + $0x100] sm:$0xff]
  %v1402 = vld [vmem:[%s1386 + $0x110] sm:$0xff]
  %v1403 = vld [vmem:[%s1386 + $0x1] sm:$0xff]
  %v1404 = vld [vmem:[%s1386 + $0x11] sm:$0xff]
  %v1405 = vld [vmem:[%s1386 + $0x21] sm:$0xff]
  %v1406 = vld [vmem:[%s1386 + $0x31] sm:$0xff]
  %v1407 = vld [vmem:[%s1386 + $0x41] sm:$0xff]
  %v1408 = vld [vmem:[%s1386 + $0x51] sm:$0xff]
  %v1409 = vld [vmem:[%s1386 + $0x61] sm:$0xff]
  %v1410 = vld [vmem:[%s1386 + $0x71] sm:$0xff]
  %v1411 = vld [vmem:[%s1386 + $0xa1] sm:$0xff]
  %v1412 = vld [vmem:[%s1386 + $0xb1] sm:$0xff]
  %v1413 = vld [vmem:[%s1386 + $0xc1] sm:$0xff]
  %v1414 = vld [vmem:[%s1386 + $0xd1] sm:$0xff]
  %v1415 = vld [vmem:[%s1386 + $0xe1] sm:$0xff]
  %v1416 = vld [vmem:[%s1386 + $0xf1] sm:$0xff]
  %v1417 = vld [vmem:[%s1386 + $0x101] sm:$0xff]
  %v1418 = vld [vmem:[%s1386 + $0x111] sm:$0xff]
  %v1419 = vld [vmem:[%s1386 + $0x2] sm:$0xff]
  %v1420 = vld [vmem:[%s1386 + $0x12] sm:$0xff]
  %v1421 = vld [vmem:[%s1386 + $0x22] sm:$0xff]
  %v1422 = vld [vmem:[%s1386 + $0x32] sm:$0xff]
  %v1423 = vld [vmem:[%s1386 + $0x42] sm:$0xff]
  %v1424 = vld [vmem:[%s1386 + $0x52] sm:$0xff]
  %v1425 = vld [vmem:[%s1386 + $0x62] sm:$0xff]
  %v1426 = vld [vmem:[%s1386 + $0x72] sm:$0xff]
  %v1427 = vld [vmem:[%s1386 + $0xa2] sm:$0xff]
  %v1428 = vld [vmem:[%s1386 + $0xb2] sm:$0xff]
  %v1429 = vld [vmem:[%s1386 + $0xc2] sm:$0xff]
  %v1430 = vld [vmem:[%s1386 + $0xd2] sm:$0xff]
  %v1431 = vld [vmem:[%s1386 + $0xe2] sm:$0xff]
  %v1432 = vld [vmem:[%s1386 + $0xf2] sm:$0xff]
  %v1433 = vld [vmem:[%s1386 + $0x102] sm:$0xff]
  %v1434 = vld [vmem:[%s1386 + $0x112] sm:$0xff]
  %1451 = vrot.lane.b32.xlu0 %v1306, 8
  %v1452 = vpop.permute.xlu0 %1451
  %1453 = vrot.lane.b32.xlu0 %v1307, 8
  %v1454 = vpop.permute.xlu0 %1453
  %1455 = vrot.lane.b32.xlu0 %v1308, 8
  %v1456 = vpop.permute.xlu0 %1455
  %1457 = vrot.lane.b32.xlu0 %v1309, 8
  %v1458 = vpop.permute.xlu0 %1457
  %1459 = vrot.lane.b32.xlu0 %v1310, 8
  %v1460 = vpop.permute.xlu0 %1459
  %1461 = vrot.lane.b32.xlu0 %v1311, 8
  %v1462 = vpop.permute.xlu0 %1461
  %1463 = vrot.lane.b32.xlu0 %v1312, 8
  %v1464 = vpop.permute.xlu0 %1463
  %1465 = vrot.lane.b32.xlu0 %v1313, 8
  %v1466 = vpop.permute.xlu0 %1465
  %1467 = vrot.lane.b32.xlu0 %v1314, 8
  %v1468 = vpop.permute.xlu0 %1467
  %1469 = vrot.lane.b32.xlu0 %v1315, 8
  %v1470 = vpop.permute.xlu0 %1469
  %1471 = vrot.lane.b32.xlu0 %v1316, 8
  %v1472 = vpop.permute.xlu0 %1471
  %1473 = vrot.lane.b32.xlu0 %v1317, 8
  %v1474 = vpop.permute.xlu0 %1473
  %1475 = vrot.lane.b32.xlu0 %v1318, 8
  %v1476 = vpop.permute.xlu0 %1475
  %1477 = vrot.lane.b32.xlu0 %v1319, 8
  %v1478 = vpop.permute.xlu0 %1477
  %1479 = vrot.lane.b32.xlu0 %v1320, 8
  %v1480 = vpop.permute.xlu0 %1479
  %1481 = vrot.lane.b32.xlu0 %v1321, 8
  %v1482 = vpop.permute.xlu0 %1481
  %1515 = vrot.lane.b32.xlu0 %v1322, 16
  %v1516 = vpop.permute.xlu0 %1515
  %1517 = vrot.lane.b32.xlu0 %v1323, 16
  %v1518 = vpop.permute.xlu0 %1517
  %1519 = vrot.lane.b32.xlu0 %v1324, 16
  %v1520 = vpop.permute.xlu0 %1519
  %1521 = vrot.lane.b32.xlu0 %v1325, 16
  %v1522 = vpop.permute.xlu0 %1521
  %1523 = vrot.lane.b32.xlu0 %v1326, 16
  %v1524 = vpop.permute.xlu0 %1523
  %1525 = vrot.lane.b32.xlu0 %v1327, 16
  %v1526 = vpop.permute.xlu0 %1525
  %1527 = vrot.lane.b32.xlu0 %v1328, 16
  %v1528 = vpop.permute.xlu0 %1527
  %1529 = vrot.lane.b32.xlu0 %v1329, 16
  %v1530 = vpop.permute.xlu0 %1529
  %1531 = vrot.lane.b32.xlu0 %v1330, 16
  %v1532 = vpop.permute.xlu0 %1531
  %1533 = vrot.lane.b32.xlu0 %v1331, 16
  %v1534 = vpop.permute.xlu0 %1533
  %1535 = vrot.lane.b32.xlu0 %v1332, 16
  %v1536 = vpop.permute.xlu0 %1535
  %1537 = vrot.lane.b32.xlu0 %v1333, 16
  %v1538 = vpop.permute.xlu0 %1537
  %1539 = vrot.lane.b32.xlu0 %v1334, 16
  %v1540 = vpop.permute.xlu0 %1539
  %1541 = vrot.lane.b32.xlu0 %v1335, 16
  %v1542 = vpop.permute.xlu0 %1541
  %1543 = vrot.lane.b32.xlu0 %v1336, 16
  %v1544 = vpop.permute.xlu0 %1543
  %1545 = vrot.lane.b32.xlu0 %v1337, 16
  %v1546 = vpop.permute.xlu0 %1545
  %1579 = vrot.lane.b32.xlu0 %v1338, 24
  %v1580 = vpop.permute.xlu0 %1579
  %1581 = vrot.lane.b32.xlu0 %v1339, 24
  %v1582 = vpop.permute.xlu0 %1581
  %1583 = vrot.lane.b32.xlu0 %v1340, 24
  %v1584 = vpop.permute.xlu0 %1583
  %1585 = vrot.lane.b32.xlu0 %v1341, 24
  %v1586 = vpop.permute.xlu0 %1585
  %1587 = vrot.lane.b32.xlu0 %v1342, 24
  %v1588 = vpop.permute.xlu0 %1587
  %1589 = vrot.lane.b32.xlu0 %v1343, 24
  %v1590 = vpop.permute.xlu0 %1589
  %1591 = vrot.lane.b32.xlu0 %v1344, 24
  %v1592 = vpop.permute.xlu0 %1591
  %1593 = vrot.lane.b32.xlu0 %v1345, 24
  %v1594 = vpop.permute.xlu0 %1593
  %1595 = vrot.lane.b32.xlu0 %v1346, 24
  %v1596 = vpop.permute.xlu0 %1595
  %1597 = vrot.lane.b32.xlu0 %v1347, 24
  %v1598 = vpop.permute.xlu0 %1597
  %1599 = vrot.lane.b32.xlu0 %v1348, 24
  %v1600 = vpop.permute.xlu0 %1599
  %1601 = vrot.lane.b32.xlu0 %v1349, 24
  %v1602 = vpop.permute.xlu0 %1601
  %1603 = vrot.lane.b32.xlu0 %v1350, 24
  %v1604 = vpop.permute.xlu0 %1603
  %1605 = vrot.lane.b32.xlu0 %v1351, 24
  %v1606 = vpop.permute.xlu0 %1605
  %1607 = vrot.lane.b32.xlu0 %v1352, 24
  %v1608 = vpop.permute.xlu0 %1607
  %1609 = vrot.lane.b32.xlu0 %v1353, 24
  %v1610 = vpop.permute.xlu0 %1609
  %1643 = vrot.lane.b32.xlu0 %v1354, 32
  %v1644 = vpop.permute.xlu0 %1643
  %1645 = vrot.lane.b32.xlu0 %v1355, 32
  %v1646 = vpop.permute.xlu0 %1645
  %1647 = vrot.lane.b32.xlu0 %v1356, 32
  %v1648 = vpop.permute.xlu0 %1647
  %1649 = vrot.lane.b32.xlu0 %v1357, 32
  %v1650 = vpop.permute.xlu0 %1649
  %1651 = vrot.lane.b32.xlu0 %v1358, 32
  %v1652 = vpop.permute.xlu0 %1651
  %1653 = vrot.lane.b32.xlu0 %v1359, 32
  %v1654 = vpop.permute.xlu0 %1653
  %1655 = vrot.lane.b32.xlu0 %v1360, 32
  %v1656 = vpop.permute.xlu0 %1655
  %1657 = vrot.lane.b32.xlu0 %v1361, 32
  %v1658 = vpop.permute.xlu0 %1657
  %1659 = vrot.lane.b32.xlu0 %v1362, 32
  %v1660 = vpop.permute.xlu0 %1659
  %1661 = vrot.lane.b32.xlu0 %v1363, 32
  %v1662 = vpop.permute.xlu0 %1661
  %1663 = vrot.lane.b32.xlu0 %v1364, 32
  %v1664 = vpop.permute.xlu0 %1663
  %1665 = vrot.lane.b32.xlu0 %v1365, 32
  %v1666 = vpop.permute.xlu0 %1665
  %1667 = vrot.lane.b32.xlu0 %v1366, 32
  %v1668 = vpop.permute.xlu0 %1667
  %1669 = vrot.lane.b32.xlu0 %v1367, 32
  %v1670 = vpop.permute.xlu0 %1669
  %1671 = vrot.lane.b32.xlu0 %v1368, 32
  %v1672 = vpop.permute.xlu0 %1671
  %1673 = vrot.lane.b32.xlu0 %v1369, 32
  %v1674 = vpop.permute.xlu0 %1673
  %1707 = vrot.lane.b32.xlu0 %v1370, 40
  %v1708 = vpop.permute.xlu0 %1707
  %1709 = vrot.lane.b32.xlu0 %v1371, 40
  %v1710 = vpop.permute.xlu0 %1709
  %1711 = vrot.lane.b32.xlu0 %v1372, 40
  %v1712 = vpop.permute.xlu0 %1711
  %1713 = vrot.lane.b32.xlu0 %v1373, 40
  %v1714 = vpop.permute.xlu0 %1713
  %1715 = vrot.lane.b32.xlu0 %v1374, 40
  %v1716 = vpop.permute.xlu0 %1715
  %1717 = vrot.lane.b32.xlu0 %v1375, 40
  %v1718 = vpop.permute.xlu0 %1717
  %1719 = vrot.lane.b32.xlu0 %v1376, 40
  %v1720 = vpop.permute.xlu0 %1719
  %1721 = vrot.lane.b32.xlu0 %v1377, 40
  %v1722 = vpop.permute.xlu0 %1721
  %1723 = vrot.lane.b32.xlu0 %v1378, 40
  %v1724 = vpop.permute.xlu0 %1723
  %1725 = vrot.lane.b32.xlu0 %v1379, 40
  %v1726 = vpop.permute.xlu0 %1725
  %1727 = vrot.lane.b32.xlu0 %v1380, 40
  %v1728 = vpop.permute.xlu0 %1727
  %1729 = vrot.lane.b32.xlu0 %v1381, 40
  %v1730 = vpop.permute.xlu0 %1729
  %1731 = vrot.lane.b32.xlu0 %v1382, 40
  %v1732 = vpop.permute.xlu0 %1731
  %1733 = vrot.lane.b32.xlu0 %v1383, 40
  %v1734 = vpop.permute.xlu0 %1733
  %1735 = vrot.lane.b32.xlu0 %v1384, 40
  %v1736 = vpop.permute.xlu0 %1735
  %1737 = vrot.lane.b32.xlu0 %v1385, 40
  %v1738 = vpop.permute.xlu0 %1737
  %1771 = vrot.lane.b32.xlu0 %v1387, 48
  %v1772 = vpop.permute.xlu0 %1771
  %1773 = vrot.lane.b32.xlu0 %v1388, 48
  %v1774 = vpop.permute.xlu0 %1773
  %1775 = vrot.lane.b32.xlu0 %v1389, 48
  %v1776 = vpop.permute.xlu0 %1775
  %1777 = vrot.lane.b32.xlu0 %v1390, 48
  %v1778 = vpop.permute.xlu0 %1777
  %1779 = vrot.lane.b32.xlu0 %v1391, 48
  %v1780 = vpop.permute.xlu0 %1779
  %1781 = vrot.lane.b32.xlu0 %v1392, 48
  %v1782 = vpop.permute.xlu0 %1781
  %1783 = vrot.lane.b32.xlu0 %v1393, 48
  %v1784 = vpop.permute.xlu0 %1783
  %1785 = vrot.lane.b32.xlu0 %v1394, 48
  %v1786 = vpop.permute.xlu0 %1785
  %1787 = vrot.lane.b32.xlu0 %v1395, 48
  %v1788 = vpop.permute.xlu0 %1787
  %1789 = vrot.lane.b32.xlu0 %v1396, 48
  %v1790 = vpop.permute.xlu0 %1789
  %1791 = vrot.lane.b32.xlu0 %v1397, 48
  %v1792 = vpop.permute.xlu0 %1791
  %1793 = vrot.lane.b32.xlu0 %v1398, 48
  %v1794 = vpop.permute.xlu0 %1793
  %1795 = vrot.lane.b32.xlu0 %v1399, 48
  %v1796 = vpop.permute.xlu0 %1795
  %1797 = vrot.lane.b32.xlu0 %v1400, 48
  %v1798 = vpop.permute.xlu0 %1797
  %1799 = vrot.lane.b32.xlu0 %v1401, 48
  %v1800 = vpop.permute.xlu0 %1799
  %1801 = vrot.lane.b32.xlu0 %v1402, 48
  %v1802 = vpop.permute.xlu0 %1801
  %1835 = vrot.lane.b32.xlu0 %v1403, 56
  %v1836 = vpop.permute.xlu0 %1835
  %1837 = vrot.lane.b32.xlu0 %v1404, 56
  %v1838 = vpop.permute.xlu0 %1837
  %1839 = vrot.lane.b32.xlu0 %v1405, 56
  %v1840 = vpop.permute.xlu0 %1839
  %1841 = vrot.lane.b32.xlu0 %v1406, 56
  %v1842 = vpop.permute.xlu0 %1841
  %1843 = vrot.lane.b32.xlu0 %v1407, 56
  %v1844 = vpop.permute.xlu0 %1843
  %1845 = vrot.lane.b32.xlu0 %v1408, 56
  %v1846 = vpop.permute.xlu0 %1845
  %1847 = vrot.lane.b32.xlu0 %v1409, 56
  %v1848 = vpop.permute.xlu0 %1847
  %1849 = vrot.lane.b32.xlu0 %v1410, 56
  %v1850 = vpop.permute.xlu0 %1849
  %1851 = vrot.lane.b32.xlu0 %v1411, 56
  %v1852 = vpop.permute.xlu0 %1851
  %1853 = vrot.lane.b32.xlu0 %v1412, 56
  %v1854 = vpop.permute.xlu0 %1853
  %1855 = vrot.lane.b32.xlu0 %v1413, 56
  %v1856 = vpop.permute.xlu0 %1855
  %1857 = vrot.lane.b32.xlu0 %v1414, 56
  %v1858 = vpop.permute.xlu0 %1857
  %1859 = vrot.lane.b32.xlu0 %v1415, 56
  %v1860 = vpop.permute.xlu0 %1859
  %1861 = vrot.lane.b32.xlu0 %v1416, 56
  %v1862 = vpop.permute.xlu0 %1861
  %1863 = vrot.lane.b32.xlu0 %v1417, 56
  %v1864 = vpop.permute.xlu0 %1863
  %1865 = vrot.lane.b32.xlu0 %v1418, 56
  %v1866 = vpop.permute.xlu0 %1865
  %1899 = vrot.lane.b32.xlu0 %v1419, 64
  %v1900 = vpop.permute.xlu0 %1899
  %1901 = vrot.lane.b32.xlu0 %v1420, 64
  %v1902 = vpop.permute.xlu0 %1901
  %1903 = vrot.lane.b32.xlu0 %v1421, 64
  %v1904 = vpop.permute.xlu0 %1903
  %1905 = vrot.lane.b32.xlu0 %v1422, 64
  %v1906 = vpop.permute.xlu0 %1905
  %1907 = vrot.lane.b32.xlu0 %v1423, 64
  %v1908 = vpop.permute.xlu0 %1907
  %1909 = vrot.lane.b32.xlu0 %v1424, 64
  %v1910 = vpop.permute.xlu0 %1909
  %1911 = vrot.lane.b32.xlu0 %v1425, 64
  %v1912 = vpop.permute.xlu0 %1911
  %1913 = vrot.lane.b32.xlu0 %v1426, 64
  %v1914 = vpop.permute.xlu0 %1913
  %1915 = vrot.lane.b32.xlu0 %v1427, 64
  %v1916 = vpop.permute.xlu0 %1915
  %1917 = vrot.lane.b32.xlu0 %v1428, 64
  %v1918 = vpop.permute.xlu0 %1917
  %1919 = vrot.lane.b32.xlu0 %v1429, 64
  %v1920 = vpop.permute.xlu0 %1919
  %1921 = vrot.lane.b32.xlu0 %v1430, 64
  %v1922 = vpop.permute.xlu0 %1921
  %1923 = vrot.lane.b32.xlu0 %v1431, 64
  %v1924 = vpop.permute.xlu0 %1923
  %1925 = vrot.lane.b32.xlu0 %v1432, 64
  %v1926 = vpop.permute.xlu0 %1925
  %1927 = vrot.lane.b32.xlu0 %v1433, 64
  %v1928 = vpop.permute.xlu0 %1927
  %1929 = vrot.lane.b32.xlu0 %v1434, 64
  %v1930 = vpop.permute.xlu0 %1929
  %v1947 = vsel %vm719, %v1290, %v1452
  %v1948 = vsel %vm719, %v1291, %v1454
  %v1949 = vsel %vm719, %v1292, %v1456
  %v1950 = vsel %vm719, %v1293, %v1458
  %v1951 = vsel %vm719, %v1294, %v1460
  %v1952 = vsel %vm719, %v1295, %v1462
  %v1953 = vsel %vm719, %v1296, %v1464
  %v1954 = vsel %vm719, %v1297, %v1466
  %v1955 = vsel %vm719, %v1298, %v1468
  %v1956 = vsel %vm719, %v1299, %v1470
  %v1957 = vsel %vm719, %v1300, %v1472
  %v1958 = vsel %vm719, %v1301, %v1474
  %v1959 = vsel %vm719, %v1302, %v1476
  %v1960 = vsel %vm719, %v1303, %v1478
  %v1961 = vsel %vm719, %v1304, %v1480
  %v1962 = vsel %vm719, %v1305, %v1482
  %v1963 = vsel %vm753, %v1947, %v1516
  %v1964 = vsel %vm753, %v1948, %v1518
  %v1965 = vsel %vm753, %v1949, %v1520
  %v1966 = vsel %vm753, %v1950, %v1522
  %v1967 = vsel %vm753, %v1951, %v1524
  %v1968 = vsel %vm753, %v1952, %v1526
  %v1969 = vsel %vm753, %v1953, %v1528
  %v1970 = vsel %vm753, %v1954, %v1530
  %v1971 = vsel %vm753, %v1955, %v1532
  %v1972 = vsel %vm753, %v1956, %v1534
  %v1973 = vsel %vm753, %v1957, %v1536
  %v1974 = vsel %vm753, %v1958, %v1538
  %v1975 = vsel %vm753, %v1959, %v1540
  %v1976 = vsel %vm753, %v1960, %v1542
  %v1977 = vsel %vm753, %v1961, %v1544
  %v1978 = vsel %vm753, %v1962, %v1546
  %v1979 = vsel %vm787, %v1963, %v1580
  %v1980 = vsel %vm787, %v1964, %v1582
  %v1981 = vsel %vm787, %v1965, %v1584
  %v1982 = vsel %vm787, %v1966, %v1586
  %v1983 = vsel %vm787, %v1967, %v1588
  %v1984 = vsel %vm787, %v1968, %v1590
  %v1985 = vsel %vm787, %v1969, %v1592
  %v1986 = vsel %vm787, %v1970, %v1594
  %v1987 = vsel %vm787, %v1971, %v1596
  %v1988 = vsel %vm787, %v1972, %v1598
  %v1989 = vsel %vm787, %v1973, %v1600
  %v1990 = vsel %vm787, %v1974, %v1602
  %v1991 = vsel %vm787, %v1975, %v1604
  %v1992 = vsel %vm787, %v1976, %v1606
  %v1993 = vsel %vm787, %v1977, %v1608
  %v1994 = vsel %vm787, %v1978, %v1610
  %v1995 = vsel %vm821, %v1979, %v1644
  %v1996 = vsel %vm821, %v1980, %v1646
  %v1997 = vsel %vm821, %v1981, %v1648
  %v1998 = vsel %vm821, %v1982, %v1650
  %v1999 = vsel %vm821, %v1983, %v1652
  %v2000 = vsel %vm821, %v1984, %v1654
  %v2001 = vsel %vm821, %v1985, %v1656
  %v2002 = vsel %vm821, %v1986, %v1658
  %v2003 = vsel %vm821, %v1987, %v1660
  %v2004 = vsel %vm821, %v1988, %v1662
  %v2005 = vsel %vm821, %v1989, %v1664
  %v2006 = vsel %vm821, %v1990, %v1666
  %v2007 = vsel %vm821, %v1991, %v1668
  %v2008 = vsel %vm821, %v1992, %v1670
  %v2009 = vsel %vm821, %v1993, %v1672
  %v2010 = vsel %vm821, %v1994, %v1674
  %vm2011 = vcmask 326656
  %v2012 = vsel %vm2011, %v1995, %v1708
  %v2013 = vsel %vm2011, %v1996, %v1710
  %v2014 = vsel %vm2011, %v1997, %v1712
  %v2015 = vsel %vm2011, %v1998, %v1714
  %v2016 = vsel %vm2011, %v1999, %v1716
  %v2017 = vsel %vm2011, %v2000, %v1718
  %v2018 = vsel %vm2011, %v2001, %v1720
  %v2019 = vsel %vm2011, %v2002, %v1722
  %v2020 = vsel %vm2011, %v2003, %v1724
  %v2021 = vsel %vm2011, %v2004, %v1726
  %v2022 = vsel %vm2011, %v2005, %v1728
  %v2023 = vsel %vm2011, %v2006, %v1730
  %v2024 = vsel %vm2011, %v2007, %v1732
  %v2025 = vsel %vm2011, %v2008, %v1734
  %v2026 = vsel %vm2011, %v2009, %v1736
  %v2027 = vsel %vm2011, %v2010, %v1738
  %vm2028 = vcmask 392192
  %v2029 = vsel %vm2028, %v2012, %v1772
  %v2030 = vsel %vm2028, %v2013, %v1774
  %v2031 = vsel %vm2028, %v2014, %v1776
  %v2032 = vsel %vm2028, %v2015, %v1778
  %v2033 = vsel %vm2028, %v2016, %v1780
  %v2034 = vsel %vm2028, %v2017, %v1782
  %v2035 = vsel %vm2028, %v2018, %v1784
  %v2036 = vsel %vm2028, %v2019, %v1786
  %v2037 = vsel %vm2028, %v2020, %v1788
  %v2038 = vsel %vm2028, %v2021, %v1790
  %v2039 = vsel %vm2028, %v2022, %v1792
  %v2040 = vsel %vm2028, %v2023, %v1794
  %v2041 = vsel %vm2028, %v2024, %v1796
  %v2042 = vsel %vm2028, %v2025, %v1798
  %v2043 = vsel %vm2028, %v2026, %v1800
  %v2044 = vsel %vm2028, %v2027, %v1802
  %vm2045 = vcmask 457728
  %v2046 = vsel %vm2045, %v2029, %v1836
  %v2047 = vsel %vm2045, %v2030, %v1838
  %v2048 = vsel %vm2045, %v2031, %v1840
  %v2049 = vsel %vm2045, %v2032, %v1842
  %v2050 = vsel %vm2045, %v2033, %v1844
  %v2051 = vsel %vm2045, %v2034, %v1846
  %v2052 = vsel %vm2045, %v2035, %v1848
  %v2053 = vsel %vm2045, %v2036, %v1850
  %v2054 = vsel %vm2045, %v2037, %v1852
  %v2055 = vsel %vm2045, %v2038, %v1854
  %v2056 = vsel %vm2045, %v2039, %v1856
  %v2057 = vsel %vm2045, %v2040, %v1858
  %v2058 = vsel %vm2045, %v2041, %v1860
  %v2059 = vsel %vm2045, %v2042, %v1862
  %v2060 = vsel %vm2045, %v2043, %v1864
  %v2061 = vsel %vm2045, %v2044, %v1866
  %vm2062 = vcmask 523264
  %v2063 = vsel %vm2062, %v2046, %v1900
  %v2064 = vsel %vm2062, %v2047, %v1902
  %v2065 = vsel %vm2062, %v2048, %v1904
  %v2066 = vsel %vm2062, %v2049, %v1906
  %v2067 = vsel %vm2062, %v2050, %v1908
  %v2068 = vsel %vm2062, %v2051, %v1910
  %v2069 = vsel %vm2062, %v2052, %v1912
  %v2070 = vsel %vm2062, %v2053, %v1914
  %v2071 = vsel %vm2062, %v2054, %v1916
  %v2072 = vsel %vm2062, %v2055, %v1918
  %v2073 = vsel %vm2062, %v2056, %v1920
  %v2074 = vsel %vm2062, %v2057, %v1922
  %v2075 = vsel %vm2062, %v2058, %v1924
  %v2076 = vsel %vm2062, %v2059, %v1926
  %v2077 = vsel %vm2062, %v2060, %v1928
  %v2078 = vsel %vm2062, %v2061, %v1930
  %v2079 = vld [vmem:[%s7] sm:$0xff]
  %v2080 = vld [vmem:[%s7 + $0x8] sm:$0xff]
  %v2081 = vld [vmem:[%s7 + $0x10] sm:$0xff]
  %v2082 = vld [vmem:[%s7 + $0x18] sm:$0xff]
  %v2083 = vld [vmem:[%s7 + $0x20] sm:$0xff]
  %v2084 = vld [vmem:[%s7 + $0x28] sm:$0xff]
  %v2085 = vld [vmem:[%s7 + $0x30] sm:$0xff]
  %v2086 = vld [vmem:[%s7 + $0x38] sm:$0xff]
  %v2087 = vld [vmem:[%s7 + $0x40] sm:$0xff]
  %vm2088 = vcmask 588800
  %v2090 = vsel %vm2088, %v2063, 0
  %v2093 = vsel %vm2088, %v2064, 0
  %v2096 = vsel %vm2088, %v2065, 0
  %v2099 = vsel %vm2088, %v2066, 0
  %v2102 = vsel %vm2088, %v2067, 0
  %v2105 = vsel %vm2088, %v2068, 0
  %v2108 = vsel %vm2088, %v2069, 0
  %v2111 = vsel %vm2088, %v2070, 0
  %v2114 = vsel %vm2088, %v2071, 0
  %v2117 = vsel %vm2088, %v2072, 0
  %v2120 = vsel %vm2088, %v2073, 0
  %v2123 = vsel %vm2088, %v2074, 0
  %v2126 = vsel %vm2088, %v2075, 0
  %v2129 = vsel %vm2088, %v2076, 0
  %v2132 = vsel %vm2088, %v2077, 0
  %v2135 = vsel %vm2088, %v2078, 0
  %2137 = vmatprep.subr.mxu0 0.0
  %2138 = vmatpush1.msra.mxu0 %v2079
  %2139 = vmatprep.subr.mxu0 0.0
  %2140 = vmatpush1.msra.mxu0 %v2080
  %2141 = vmatprep.subr.mxu0 0.0
  %2142 = vmatpush1.msra.mxu0 %v2081
  %2143 = vmatprep.subr.mxu0 0.0
  %2144 = vmatpush1.msra.mxu0 %v2082
  %2145 = vmatprep.subr.mxu0 0.0
  %2146 = vmatpush1.msra.mxu0 %v2083
  %2147 = vmatprep.subr.mxu0 0.0
  %2148 = vmatpush1.msra.mxu0 %v2084
  %2149 = vmatprep.subr.mxu0 0.0
  %2150 = vmatpush1.msra.mxu0 %v2085
  %2151 = vmatprep.subr.mxu0 0.0
  %2152 = vmatpush1.msra.mxu0 %v2086
  %2153 = vmatprep.subr.mxu0 0.0
  %2154 = vmatpush1.msra.mxu0 %v2087
  %2155 = vmatprep.subr.mxu0 0.0
  %2156 = vmatpush1.msra.mxu0 0.0
  %2157 = vmatprep.subr.mxu0 0.0
  %2158 = vmatpush1.msra.mxu0 0.0
  %2159 = vmatprep.subr.mxu0 0.0
  %2160 = vmatpush1.msra.mxu0 0.0
  %2161 = vmatprep.subr.mxu0 0.0
  %2162 = vmatpush1.msra.mxu0 0.0
  %2163 = vmatprep.subr.mxu0 0.0
  %2164 = vmatpush1.msra.mxu0 0.0
  %2165 = vmatprep.subr.mxu0 0.0
  %2166 = vmatpush1.msra.mxu0 0.0
  %2167 = vmatprep.subr.mxu0 0.0
  %2168 = vmatpush1.msra.mxu0 0.0
  %2169 = vmatprep.subr.mxu0 0.0
  %2170 = vmatpush1.msra.mxu0 0.0
  %2171 = vmatprep.subr.mxu0 0.0
  %2172 = vmatpush1.msra.mxu0 0.0
  %2173 = vmatprep.subr.mxu0 0.0
  %2174 = vmatpush1.msra.mxu0 0.0
  %2175 = vmatprep.subr.mxu0 0.0
  %2176 = vmatpush1.msra.mxu0 0.0
  %2177 = vmatprep.subr.mxu0 0.0
  %2178 = vmatpush1.msra.mxu0 0.0
  %2179 = vmatprep.subr.mxu0 0.0
  %2180 = vmatpush1.msra.mxu0 0.0
  %2181 = vmatprep.subr.mxu0 0.0
  %2182 = vmatpush1.msra.mxu0 0.0
  %2183 = vmatprep.subr.mxu0 0.0
  %2184 = vmatpush1.msra.mxu0 0.0
  %2185 = vmatprep.subr.mxu0 0.0
  %2186 = vmatpush1.msra.mxu0 0.0
  %2187 = vmatprep.subr.mxu0 0.0
  %2188 = vmatpush1.msra.mxu0 0.0
  %2189 = vmatprep.subr.mxu0 0.0
  %2190 = vmatpush1.msra.mxu0 0.0
  %2191 = vmatprep.subr.mxu0 0.0
  %2192 = vmatpush1.msra.mxu0 0.0
  %2193 = vmatprep.subr.mxu0 0.0
  %2194 = vmatpush1.msra.mxu0 0.0
  %2195 = vmatprep.subr.mxu0 0.0
  %2196 = vmatpush1.msra.mxu0 0.0
  %2197 = vmatprep.subr.mxu0 0.0
  %2198 = vmatpush1.msra.mxu0 0.0
  %2199 = vmatprep.subr.mxu0 0.0
  %2200 = vmatpush1.msra.mxu0 0.0
  %2201 = vmatprep.mubr.f32.mxu0 0.0
  %2202 = vmatmul.mubr.f32.gmra.mrb[0].mxu0 %v2090
  %v2203 = vpop.f32.mrb[0].mxu0
  %v2204 = vadd.f32 0.0, %v2203
  %v2205 = vpop.f32.mrb[0].mxu0
  %2206 = vmatprep.mubr.f32.mxu0 0.0
  %2207 = vmatmul.mubr.f32.gmra.mrb[0].mxu0 %v2093
  %v2208 = vpop.f32.mrb[0].mxu0
  %v2209 = vadd.f32 0.0, %v2208
  %v2210 = vpop.f32.mrb[0].mxu0
  %2211 = vmatprep.mubr.f32.mxu0 0.0
  %2212 = vmatmul.mubr.f32.gmra.mrb[0].mxu0 %v2096
  %v2213 = vpop.f32.mrb[0].mxu0
  %v2214 = vadd.f32 0.0, %v2213
  %v2215 = vpop.f32.mrb[0].mxu0
  %2216 = vmatprep.mubr.f32.mxu0 0.0
  %2217 = vmatmul.mubr.f32.gmra.mrb[0].mxu0 %v2099
  %v2218 = vpop.f32.mrb[0].mxu0
  %v2219 = vadd.f32 0.0, %v2218
  %v2220 = vpop.f32.mrb[0].mxu0
  %2221 = vmatprep.mubr.f32.mxu0 0.0
  %2222 = vmatmul.mubr.f32.gmra.mrb[0].mxu0 %v2102
  %v2223 = vpop.f32.mrb[0].mxu0
  %v2224 = vadd.f32 0.0, %v2223
  %v2225 = vpop.f32.mrb[0].mxu0
  %2226 = vmatprep.mubr.f32.mxu0 0.0
  %2227 = vmatmul.mubr.f32.gmra.mrb[0].mxu0 %v2105
  %v2228 = vpop.f32.mrb[0].mxu0
  %v2229 = vadd.f32 0.0, %v2228
  %v2230 = vpop.f32.mrb[0].mxu0
  %2231 = vmatprep.mubr.f32.mxu0 0.0
  %2232 = vmatmul.mubr.f32.gmra.mrb[0].mxu0 %v2108
  %v2233 = vpop.f32.mrb[0].mxu0
  %v2234 = vadd.f32 0.0, %v2233
  %v2235 = vpop.f32.mrb[0].mxu0
  %2236 = vmatprep.mubr.f32.mxu0 0.0
  %2237 = vmatmul.mubr.f32.gmra.mrb[0].mxu0 %v2111
  %v2238 = vpop.f32.mrb[0].mxu0
  %v2239 = vadd.f32 0.0, %v2238
  %v2240 = vpop.f32.mrb[0].mxu0
  %2241 = vmatprep.mubr.f32.mxu0 0.0
  %2242 = vmatmul.mubr.f32.gmra.mrb[0].mxu0 %v2114
  %v2243 = vpop.f32.mrb[0].mxu0
  %v2244 = vadd.f32 0.0, %v2243
  %v2245 = vpop.f32.mrb[0].mxu0
  %2246 = vmatprep.mubr.f32.mxu0 0.0
  %2247 = vmatmul.mubr.f32.gmra.mrb[0].mxu0 %v2117
  %v2248 = vpop.f32.mrb[0].mxu0
  %v2249 = vadd.f32 0.0, %v2248
  %v2250 = vpop.f32.mrb[0].mxu0
  %2251 = vmatprep.mubr.f32.mxu0 0.0
  %2252 = vmatmul.mubr.f32.gmra.mrb[0].mxu0 %v2120
  %v2253 = vpop.f32.mrb[0].mxu0
  %v2254 = vadd.f32 0.0, %v2253
  %v2255 = vpop.f32.mrb[0].mxu0
  %2256 = vmatprep.mubr.f32.mxu0 0.0
  %2257 = vmatmul.mubr.f32.gmra.mrb[0].mxu0 %v2123
  %v2258 = vpop.f32.mrb[0].mxu0
  %v2259 = vadd.f32 0.0, %v2258
  %v2260 = vpop.f32.mrb[0].mxu0
  %2261 = vmatprep.mubr.f32.mxu0 0.0
  %2262 = vmatmul.mubr.f32.gmra.mrb[0].mxu0 %v2126
  %v2263 = vpop.f32.mrb[0].mxu0
  %v2264 = vadd.f32 0.0, %v2263
  %v2265 = vpop.f32.mrb[0].mxu0
  %2266 = vmatprep.mubr.f32.mxu0 0.0
  %2267 = vmatmul.mubr.f32.gmra.mrb[0].mxu0 %v2129
  %v2268 = vpop.f32.mrb[0].mxu0
  %v2269 = vadd.f32 0.0, %v2268
  %v2270 = vpop.f32.mrb[0].mxu0
  %2271 = vmatprep.mubr.f32.mxu0 0.0
  %2272 = vmatmul.mubr.f32.gmra.mrb[0].mxu0 %v2132
  %v2273 = vpop.f32.mrb[0].mxu0
  %v2274 = vadd.f32 0.0, %v2273
  %v2275 = vpop.f32.mrb[0].mxu0
  %2276 = vmatprep.mubr.f32.mxu0 0.0
  %2277 = vmatmul.mubr.f32.gmra.mrb[0].mxu0 %v2135
  %v2278 = vpop.f32.mrb[0].mxu0
  %v2279 = vadd.f32 0.0, %v2278
  %v2280 = vpop.f32.mrb[0].mxu0
  %2281 = vdwg.mxu0
  %v2282 = vld [vmem:[%s8] sm:$0x1]
  %v2283 = vld [vmem:[%s9] sm:$0x1]
  %v2284 = vsel %vm719, %v2204, 0.0
  %v2285 = vsel %vm719, %v2209, 0.0
  %v2286 = vadd.f32 %v2284, %v2285
  %v2287 = vsel %vm719, %v2214, 0.0
  %v2288 = vadd.f32 %v2286, %v2287
  %v2289 = vsel %vm719, %v2219, 0.0
  %v2290 = vadd.f32 %v2288, %v2289
  %v2291 = vsel %vm719, %v2224, 0.0
  %v2292 = vadd.f32 %v2290, %v2291
  %v2293 = vsel %vm719, %v2229, 0.0
  %v2294 = vadd.f32 %v2292, %v2293
  %v2295 = vsel %vm719, %v2234, 0.0
  %v2296 = vadd.f32 %v2294, %v2295
  %v2297 = vsel %vm719, %v2239, 0.0
  %v2298 = vadd.f32 %v2296, %v2297
  %v2299 = vsel %vm719, %v2244, 0.0
  %v2300 = vadd.f32 %v2298, %v2299
  %v2301 = vsel %vm719, %v2249, 0.0
  %v2302 = vadd.f32 %v2300, %v2301
  %v2303 = vsel %vm719, %v2254, 0.0
  %v2304 = vadd.f32 %v2302, %v2303
  %v2305 = vsel %vm719, %v2259, 0.0
  %v2306 = vadd.f32 %v2304, %v2305
  %v2307 = vsel %vm719, %v2264, 0.0
  %v2308 = vadd.f32 %v2306, %v2307
  %v2309 = vsel %vm719, %v2269, 0.0
  %v2310 = vadd.f32 %v2308, %v2309
  %v2311 = vsel %vm719, %v2274, 0.0
  %v2312 = vadd.f32 %v2310, %v2311
  %v2313 = vsel %vm719, %v2279, 0.0
  %v2314 = vadd.f32 %v2312, %v2313
  %v2315 = vrot.slane %v2314, 4
  %v2316 = vadd.f32 %v2314, %v2315
  %v2317 = vrot.slane %v2316, 2
  %v2318 = vadd.f32 %v2316, %v2317
  %v2319 = vrot.slane %v2318, 1
  %v2320 = vadd.f32 %v2318, %v2319
  %v2321 = vmul.f32 %v2320, %v1080
  %v2322 = vsub.f32 %v2204, %v2321
  %v2323 = vsub.f32 %v2209, %v2321
  %v2324 = vsub.f32 %v2214, %v2321
  %v2325 = vsub.f32 %v2219, %v2321
  %v2326 = vsub.f32 %v2224, %v2321
  %v2327 = vsub.f32 %v2229, %v2321
  %v2328 = vsub.f32 %v2234, %v2321
  %v2329 = vsub.f32 %v2239, %v2321
  %v2330 = vsub.f32 %v2244, %v2321
  %v2331 = vsub.f32 %v2249, %v2321
  %v2332 = vsub.f32 %v2254, %v2321
  %v2333 = vsub.f32 %v2259, %v2321
  %v2334 = vsub.f32 %v2264, %v2321
  %v2335 = vsub.f32 %v2269, %v2321
  %v2336 = vsub.f32 %v2274, %v2321
  %v2337 = vsub.f32 %v2279, %v2321
  %v2338 = vmul.f32 %v2322, %v2322
  %v2339 = vmul.f32 %v2323, %v2323
  %v2340 = vmul.f32 %v2324, %v2324
  %v2341 = vmul.f32 %v2325, %v2325
  %v2342 = vmul.f32 %v2326, %v2326
  %v2343 = vmul.f32 %v2327, %v2327
  %v2344 = vmul.f32 %v2328, %v2328
  %v2345 = vmul.f32 %v2329, %v2329
  %v2346 = vmul.f32 %v2330, %v2330
  %v2347 = vmul.f32 %v2331, %v2331
  %v2348 = vmul.f32 %v2332, %v2332
  %v2349 = vmul.f32 %v2333, %v2333
  %v2350 = vmul.f32 %v2334, %v2334
  %v2351 = vmul.f32 %v2335, %v2335
  %v2352 = vmul.f32 %v2336, %v2336
  %v2353 = vmul.f32 %v2337, %v2337
  %v2354 = vsel %vm719, %v2338, 0.0
  %v2355 = vsel %vm719, %v2339, 0.0
  %v2356 = vadd.f32 %v2354, %v2355
  %v2357 = vsel %vm719, %v2340, 0.0
  %v2358 = vadd.f32 %v2356, %v2357
  %v2359 = vsel %vm719, %v2341, 0.0
  %v2360 = vadd.f32 %v2358, %v2359
  %v2361 = vsel %vm719, %v2342, 0.0
  %v2362 = vadd.f32 %v2360, %v2361
  %v2363 = vsel %vm719, %v2343, 0.0
  %v2364 = vadd.f32 %v2362, %v2363
  %v2365 = vsel %vm719, %v2344, 0.0
  %v2366 = vadd.f32 %v2364, %v2365
  %v2367 = vsel %vm719, %v2345, 0.0
  %v2368 = vadd.f32 %v2366, %v2367
  %v2369 = vsel %vm719, %v2346, 0.0
  %v2370 = vadd.f32 %v2368, %v2369
  %v2371 = vsel %vm719, %v2347, 0.0
  %v2372 = vadd.f32 %v2370, %v2371
  %v2373 = vsel %vm719, %v2348, 0.0
  %v2374 = vadd.f32 %v2372, %v2373
  %v2375 = vsel %vm719, %v2349, 0.0
  %v2376 = vadd.f32 %v2374, %v2375
  %v2377 = vsel %vm719, %v2350, 0.0
  %v2378 = vadd.f32 %v2376, %v2377
  %v2379 = vsel %vm719, %v2351, 0.0
  %v2380 = vadd.f32 %v2378, %v2379
  %v2381 = vsel %vm719, %v2352, 0.0
  %v2382 = vadd.f32 %v2380, %v2381
  %v2383 = vsel %vm719, %v2353, 0.0
  %v2384 = vadd.f32 %v2382, %v2383
  %v2385 = vrot.slane %v2384, 4
  %v2386 = vadd.f32 %v2384, %v2385
  %v2387 = vrot.slane %v2386, 2
  %v2388 = vadd.f32 %v2386, %v2387
  %v2389 = vrot.slane %v2388, 1
  %v2390 = vadd.f32 %v2388, %v2389
  %v2391 = vmul.f32 %v2390, %v1080
  %v2392 = vadd.f32 %v2391, 1e-05
  %v2393 = vrsqrt.pop %v2392
  %v2394 = vmul.f32 %v2322, %v2393
  %v2395 = vmul.f32 %v2323, %v2393
  %v2396 = vmul.f32 %v2324, %v2393
  %v2397 = vmul.f32 %v2325, %v2393
  %v2398 = vmul.f32 %v2326, %v2393
  %v2399 = vmul.f32 %v2327, %v2393
  %v2400 = vmul.f32 %v2328, %v2393
  %v2401 = vmul.f32 %v2329, %v2393
  %v2402 = vmul.f32 %v2330, %v2393
  %v2403 = vmul.f32 %v2331, %v2393
  %v2404 = vmul.f32 %v2332, %v2393
  %v2405 = vmul.f32 %v2333, %v2393
  %v2406 = vmul.f32 %v2334, %v2393
  %v2407 = vmul.f32 %v2335, %v2393
  %v2408 = vmul.f32 %v2336, %v2393
  %v2409 = vmul.f32 %v2337, %v2393
  %v2411 = vlaneseq
  %v2412 = vshrl.u32 %v2411, 7
  %v2413 = vsub.s32 0, %v2412
  %v2414 = vrot.slane %v2282, %v2413
  %v2416 = vmul.f32 %v2394, %v2414
  %v2417 = vmul.f32 %v2395, %v2414
  %v2418 = vmul.f32 %v2396, %v2414
  %v2419 = vmul.f32 %v2397, %v2414
  %v2420 = vmul.f32 %v2398, %v2414
  %v2421 = vmul.f32 %v2399, %v2414
  %v2422 = vmul.f32 %v2400, %v2414
  %v2423 = vmul.f32 %v2401, %v2414
  %v2424 = vmul.f32 %v2402, %v2414
  %v2425 = vmul.f32 %v2403, %v2414
  %v2426 = vmul.f32 %v2404, %v2414
  %v2427 = vmul.f32 %v2405, %v2414
  %v2428 = vmul.f32 %v2406, %v2414
  %v2429 = vmul.f32 %v2407, %v2414
  %v2430 = vmul.f32 %v2408, %v2414
  %v2431 = vmul.f32 %v2409, %v2414
  %v2433 = vlaneseq
  %v2434 = vshrl.u32 %v2433, 7
  %v2435 = vsub.s32 0, %v2434
  %v2436 = vrot.slane %v2283, %v2435
  %v2438 = vadd.f32 %v2416, %v2436
  %v2439 = vadd.f32 %v2417, %v2436
  %v2440 = vadd.f32 %v2418, %v2436
  %v2441 = vadd.f32 %v2419, %v2436
  %v2442 = vadd.f32 %v2420, %v2436
  %v2443 = vadd.f32 %v2421, %v2436
  %v2444 = vadd.f32 %v2422, %v2436
  %v2445 = vadd.f32 %v2423, %v2436
  %v2446 = vadd.f32 %v2424, %v2436
  %v2447 = vadd.f32 %v2425, %v2436
  %v2448 = vadd.f32 %v2426, %v2436
  %v2449 = vadd.f32 %v2427, %v2436
  %v2450 = vadd.f32 %v2428, %v2436
  %v2451 = vadd.f32 %v2429, %v2436
  %v2452 = vadd.f32 %v2430, %v2436
  %v2453 = vadd.f32 %v2431, %v2436
  %v2454 = vld [vmem:[%s10] sm:$0xf]
  %2455 = vrot.lane.b32.xlu0 %v822, 112
  %v2456 = vpop.permute.xlu0 %2455
  %2457 = vrot.lane.b32.xlu0 %v823, 112
  %v2458 = vpop.permute.xlu0 %2457
  %2459 = vrot.lane.b32.xlu0 %v824, 112
  %v2460 = vpop.permute.xlu0 %2459
  %2461 = vrot.lane.b32.xlu0 %v825, 112
  %v2462 = vpop.permute.xlu0 %2461
  %2463 = vrot.lane.b32.xlu0 %v826, 112
  %v2464 = vpop.permute.xlu0 %2463
  %2465 = vrot.lane.b32.xlu0 %v827, 112
  %v2466 = vpop.permute.xlu0 %2465
  %2467 = vrot.lane.b32.xlu0 %v828, 112
  %v2468 = vpop.permute.xlu0 %2467
  %2469 = vrot.lane.b32.xlu0 %v829, 112
  %v2470 = vpop.permute.xlu0 %2469
  %2471 = vrot.lane.b32.xlu0 %v830, 112
  %v2472 = vpop.permute.xlu0 %2471
  %2473 = vrot.lane.b32.xlu0 %v831, 112
  %v2474 = vpop.permute.xlu0 %2473
  %2475 = vrot.lane.b32.xlu0 %v832, 112
  %v2476 = vpop.permute.xlu0 %2475
  %2477 = vrot.lane.b32.xlu0 %v833, 112
  %v2478 = vpop.permute.xlu0 %2477
  %2479 = vrot.lane.b32.xlu0 %v834, 112
  %v2480 = vpop.permute.xlu0 %2479
  %2481 = vrot.lane.b32.xlu0 %v835, 112
  %v2482 = vpop.permute.xlu0 %2481
  %2483 = vrot.lane.b32.xlu0 %v836, 112
  %v2484 = vpop.permute.xlu0 %2483
  %2485 = vrot.lane.b32.xlu0 %v837, 112
  %v2486 = vpop.permute.xlu0 %2485
  %v2487 = vsel %vm702, %v2456, 0
  %v2489 = vsel %vm702, %v2458, 0
  %v2491 = vsel %vm702, %v2460, 0
  %v2493 = vsel %vm702, %v2462, 0
  %v2495 = vsel %vm702, %v2464, 0
  %v2497 = vsel %vm702, %v2466, 0
  %v2499 = vsel %vm702, %v2468, 0
  %v2501 = vsel %vm702, %v2470, 0
  %v2503 = vsel %vm702, %v2472, 0
  %v2505 = vsel %vm702, %v2474, 0
  %v2507 = vsel %vm702, %v2476, 0
  %v2509 = vsel %vm702, %v2478, 0
  %v2511 = vsel %vm702, %v2480, 0
  %v2513 = vsel %vm702, %v2482, 0
  %v2515 = vsel %vm702, %v2484, 0
  %v2517 = vsel %vm702, %v2486, 0
  %v2520 = vsel %vm892, %v2454, 0
  %2522 = vmatprep.subr.mxu0 0.0
  %2523 = vmatpush1.msra.mxu0 %v2520
  %2524 = vmatprep.subr.mxu0 0.0
  %2525 = vmatpush1.msra.mxu0 0.0
  %2526 = vmatprep.subr.mxu0 0.0
  %2527 = vmatpush1.msra.mxu0 0.0
  %2528 = vmatprep.subr.mxu0 0.0
  %2529 = vmatpush1.msra.mxu0 0.0
  %2530 = vmatprep.subr.mxu0 0.0
  %2531 = vmatpush1.msra.mxu0 0.0
  %2532 = vmatprep.subr.mxu0 0.0
  %2533 = vmatpush1.msra.mxu0 0.0
  %2534 = vmatprep.subr.mxu0 0.0
  %2535 = vmatpush1.msra.mxu0 0.0
  %2536 = vmatprep.subr.mxu0 0.0
  %2537 = vmatpush1.msra.mxu0 0.0
  %2538 = vmatprep.subr.mxu0 0.0
  %2539 = vmatpush1.msra.mxu0 0.0
  %2540 = vmatprep.subr.mxu0 0.0
  %2541 = vmatpush1.msra.mxu0 0.0
  %2542 = vmatprep.subr.mxu0 0.0
  %2543 = vmatpush1.msra.mxu0 0.0
  %2544 = vmatprep.subr.mxu0 0.0
  %2545 = vmatpush1.msra.mxu0 0.0
  %2546 = vmatprep.subr.mxu0 0.0
  %2547 = vmatpush1.msra.mxu0 0.0
  %2548 = vmatprep.subr.mxu0 0.0
  %2549 = vmatpush1.msra.mxu0 0.0
  %2550 = vmatprep.subr.mxu0 0.0
  %2551 = vmatpush1.msra.mxu0 0.0
  %2552 = vmatprep.subr.mxu0 0.0
  %2553 = vmatpush1.msra.mxu0 0.0
  %2554 = vmatprep.subr.mxu0 0.0
  %2555 = vmatpush1.msra.mxu0 0.0
  %2556 = vmatprep.subr.mxu0 0.0
  %2557 = vmatpush1.msra.mxu0 0.0
  %2558 = vmatprep.subr.mxu0 0.0
  %2559 = vmatpush1.msra.mxu0 0.0
  %2560 = vmatprep.subr.mxu0 0.0
  %2561 = vmatpush1.msra.mxu0 0.0
  %2562 = vmatprep.subr.mxu0 0.0
  %2563 = vmatpush1.msra.mxu0 0.0
  %2564 = vmatprep.subr.mxu0 0.0
  %2565 = vmatpush1.msra.mxu0 0.0
  %2566 = vmatprep.subr.mxu0 0.0
  %2567 = vmatpush1.msra.mxu0 0.0
  %2568 = vmatprep.subr.mxu0 0.0
  %2569 = vmatpush1.msra.mxu0 0.0
  %2570 = vmatprep.subr.mxu0 0.0
  %2571 = vmatpush1.msra.mxu0 0.0
  %2572 = vmatprep.subr.mxu0 0.0
  %2573 = vmatpush1.msra.mxu0 0.0
  %2574 = vmatprep.subr.mxu0 0.0
  %2575 = vmatpush1.msra.mxu0 0.0
  %2576 = vmatprep.subr.mxu0 0.0
  %2577 = vmatpush1.msra.mxu0 0.0
  %2578 = vmatprep.subr.mxu0 0.0
  %2579 = vmatpush1.msra.mxu0 0.0
  %2580 = vmatprep.subr.mxu0 0.0
  %2581 = vmatpush1.msra.mxu0 0.0
  %2582 = vmatprep.subr.mxu0 0.0
  %2583 = vmatpush1.msra.mxu0 0.0
  %2584 = vmatprep.subr.mxu0 0.0
  %2585 = vmatpush1.msra.mxu0 0.0
  %2586 = vmatprep.mubr.f32.mxu0 0.0
  %2587 = vmatmul.mubr.f32.gmra.mrb[0].mxu0 %v2487
  %v2588 = vpop.f32.mrb[0].mxu0
  %v2589 = vadd.f32 0.0, %v2588
  %v2590 = vpop.f32.mrb[0].mxu0
  %2591 = vmatprep.mubr.f32.mxu0 0.0
  %2592 = vmatmul.mubr.f32.gmra.mrb[0].mxu0 %v2489
  %v2593 = vpop.f32.mrb[0].mxu0
  %v2594 = vadd.f32 0.0, %v2593
  %v2595 = vpop.f32.mrb[0].mxu0
  %2596 = vmatprep.mubr.f32.mxu0 0.0
  %2597 = vmatmul.mubr.f32.gmra.mrb[0].mxu0 %v2491
  %v2598 = vpop.f32.mrb[0].mxu0
  %v2599 = vadd.f32 0.0, %v2598
  %v2600 = vpop.f32.mrb[0].mxu0
  %2601 = vmatprep.mubr.f32.mxu0 0.0
  %2602 = vmatmul.mubr.f32.gmra.mrb[0].mxu0 %v2493
  %v2603 = vpop.f32.mrb[0].mxu0
  %v2604 = vadd.f32 0.0, %v2603
  %v2605 = vpop.f32.mrb[0].mxu0
  %2606 = vmatprep.mubr.f32.mxu0 0.0
  %2607 = vmatmul.mubr.f32.gmra.mrb[0].mxu0 %v2495
  %v2608 = vpop.f32.mrb[0].mxu0
  %v2609 = vadd.f32 0.0, %v2608
  %v2610 = vpop.f32.mrb[0].mxu0
  %2611 = vmatprep.mubr.f32.mxu0 0.0
  %2612 = vmatmul.mubr.f32.gmra.mrb[0].mxu0 %v2497
  %v2613 = vpop.f32.mrb[0].mxu0
  %v2614 = vadd.f32 0.0, %v2613
  %v2615 = vpop.f32.mrb[0].mxu0
  %2616 = vmatprep.mubr.f32.mxu0 0.0
  %2617 = vmatmul.mubr.f32.gmra.mrb[0].mxu0 %v2499
  %v2618 = vpop.f32.mrb[0].mxu0
  %v2619 = vadd.f32 0.0, %v2618
  %v2620 = vpop.f32.mrb[0].mxu0
  %2621 = vmatprep.mubr.f32.mxu0 0.0
  %2622 = vmatmul.mubr.f32.gmra.mrb[0].mxu0 %v2501
  %v2623 = vpop.f32.mrb[0].mxu0
  %v2624 = vadd.f32 0.0, %v2623
  %v2625 = vpop.f32.mrb[0].mxu0
  %2626 = vmatprep.mubr.f32.mxu0 0.0
  %2627 = vmatmul.mubr.f32.gmra.mrb[0].mxu0 %v2503
  %v2628 = vpop.f32.mrb[0].mxu0
  %v2629 = vadd.f32 0.0, %v2628
  %v2630 = vpop.f32.mrb[0].mxu0
  %2631 = vmatprep.mubr.f32.mxu0 0.0
  %2632 = vmatmul.mubr.f32.gmra.mrb[0].mxu0 %v2505
  %v2633 = vpop.f32.mrb[0].mxu0
  %v2634 = vadd.f32 0.0, %v2633
  %v2635 = vpop.f32.mrb[0].mxu0
  %2636 = vmatprep.mubr.f32.mxu0 0.0
  %2637 = vmatmul.mubr.f32.gmra.mrb[0].mxu0 %v2507
  %v2638 = vpop.f32.mrb[0].mxu0
  %v2639 = vadd.f32 0.0, %v2638
  %v2640 = vpop.f32.mrb[0].mxu0
  %2641 = vmatprep.mubr.f32.mxu0 0.0
  %2642 = vmatmul.mubr.f32.gmra.mrb[0].mxu0 %v2509
  %v2643 = vpop.f32.mrb[0].mxu0
  %v2644 = vadd.f32 0.0, %v2643
  %v2645 = vpop.f32.mrb[0].mxu0
  %2646 = vmatprep.mubr.f32.mxu0 0.0
  %2647 = vmatmul.mubr.f32.gmra.mrb[0].mxu0 %v2511
  %v2648 = vpop.f32.mrb[0].mxu0
  %v2649 = vadd.f32 0.0, %v2648
  %v2650 = vpop.f32.mrb[0].mxu0
  %2651 = vmatprep.mubr.f32.mxu0 0.0
  %2652 = vmatmul.mubr.f32.gmra.mrb[0].mxu0 %v2513
  %v2653 = vpop.f32.mrb[0].mxu0
  %v2654 = vadd.f32 0.0, %v2653
  %v2655 = vpop.f32.mrb[0].mxu0
  %2656 = vmatprep.mubr.f32.mxu0 0.0
  %2657 = vmatmul.mubr.f32.gmra.mrb[0].mxu0 %v2515
  %v2658 = vpop.f32.mrb[0].mxu0
  %v2659 = vadd.f32 0.0, %v2658
  %v2660 = vpop.f32.mrb[0].mxu0
  %2661 = vmatprep.mubr.f32.mxu0 0.0
  %2662 = vmatmul.mubr.f32.gmra.mrb[0].mxu0 %v2517
  %v2663 = vpop.f32.mrb[0].mxu0
  %v2664 = vadd.f32 0.0, %v2663
  %v2665 = vpop.f32.mrb[0].mxu0
  %2666 = vdwg.mxu0
  %v2667 = vld [vmem:[%s11] sm:$0x1]
  %v2668 = vld [vmem:[%s12] sm:$0x1]
  %v2669 = vsel %vm719, %v2589, 0.0
  %v2670 = vsel %vm719, %v2594, 0.0
  %v2671 = vadd.f32 %v2669, %v2670
  %v2672 = vsel %vm719, %v2599, 0.0
  %v2673 = vadd.f32 %v2671, %v2672
  %v2674 = vsel %vm719, %v2604, 0.0
  %v2675 = vadd.f32 %v2673, %v2674
  %v2676 = vsel %vm719, %v2609, 0.0
  %v2677 = vadd.f32 %v2675, %v2676
  %v2678 = vsel %vm719, %v2614, 0.0
  %v2679 = vadd.f32 %v2677, %v2678
  %v2680 = vsel %vm719, %v2619, 0.0
  %v2681 = vadd.f32 %v2679, %v2680
  %v2682 = vsel %vm719, %v2624, 0.0
  %v2683 = vadd.f32 %v2681, %v2682
  %v2684 = vsel %vm719, %v2629, 0.0
  %v2685 = vadd.f32 %v2683, %v2684
  %v2686 = vsel %vm719, %v2634, 0.0
  %v2687 = vadd.f32 %v2685, %v2686
  %v2688 = vsel %vm719, %v2639, 0.0
  %v2689 = vadd.f32 %v2687, %v2688
  %v2690 = vsel %vm719, %v2644, 0.0
  %v2691 = vadd.f32 %v2689, %v2690
  %v2692 = vsel %vm719, %v2649, 0.0
  %v2693 = vadd.f32 %v2691, %v2692
  %v2694 = vsel %vm719, %v2654, 0.0
  %v2695 = vadd.f32 %v2693, %v2694
  %v2696 = vsel %vm719, %v2659, 0.0
  %v2697 = vadd.f32 %v2695, %v2696
  %v2698 = vsel %vm719, %v2664, 0.0
  %v2699 = vadd.f32 %v2697, %v2698
  %v2700 = vrot.slane %v2699, 4
  %v2701 = vadd.f32 %v2699, %v2700
  %v2702 = vrot.slane %v2701, 2
  %v2703 = vadd.f32 %v2701, %v2702
  %v2704 = vrot.slane %v2703, 1
  %v2705 = vadd.f32 %v2703, %v2704
  %v2706 = vmul.f32 %v2705, %v1080
  %v2707 = vsub.f32 %v2589, %v2706
  %v2708 = vsub.f32 %v2594, %v2706
  %v2709 = vsub.f32 %v2599, %v2706
  %v2710 = vsub.f32 %v2604, %v2706
  %v2711 = vsub.f32 %v2609, %v2706
  %v2712 = vsub.f32 %v2614, %v2706
  %v2713 = vsub.f32 %v2619, %v2706
  %v2714 = vsub.f32 %v2624, %v2706
  %v2715 = vsub.f32 %v2629, %v2706
  %v2716 = vsub.f32 %v2634, %v2706
  %v2717 = vsub.f32 %v2639, %v2706
  %v2718 = vsub.f32 %v2644, %v2706
  %v2719 = vsub.f32 %v2649, %v2706
  %v2720 = vsub.f32 %v2654, %v2706
  %v2721 = vsub.f32 %v2659, %v2706
  %v2722 = vsub.f32 %v2664, %v2706
  %v2723 = vmul.f32 %v2707, %v2707
  %v2724 = vmul.f32 %v2708, %v2708
  %v2725 = vmul.f32 %v2709, %v2709
  %v2726 = vmul.f32 %v2710, %v2710
  %v2727 = vmul.f32 %v2711, %v2711
  %v2728 = vmul.f32 %v2712, %v2712
  %v2729 = vmul.f32 %v2713, %v2713
  %v2730 = vmul.f32 %v2714, %v2714
  %v2731 = vmul.f32 %v2715, %v2715
  %v2732 = vmul.f32 %v2716, %v2716
  %v2733 = vmul.f32 %v2717, %v2717
  %v2734 = vmul.f32 %v2718, %v2718
  %v2735 = vmul.f32 %v2719, %v2719
  %v2736 = vmul.f32 %v2720, %v2720
  %v2737 = vmul.f32 %v2721, %v2721
  %v2738 = vmul.f32 %v2722, %v2722
  %v2739 = vsel %vm719, %v2723, 0.0
  %v2740 = vsel %vm719, %v2724, 0.0
  %v2741 = vadd.f32 %v2739, %v2740
  %v2742 = vsel %vm719, %v2725, 0.0
  %v2743 = vadd.f32 %v2741, %v2742
  %v2744 = vsel %vm719, %v2726, 0.0
  %v2745 = vadd.f32 %v2743, %v2744
  %v2746 = vsel %vm719, %v2727, 0.0
  %v2747 = vadd.f32 %v2745, %v2746
  %v2748 = vsel %vm719, %v2728, 0.0
  %v2749 = vadd.f32 %v2747, %v2748
  %v2750 = vsel %vm719, %v2729, 0.0
  %v2751 = vadd.f32 %v2749, %v2750
  %v2752 = vsel %vm719, %v2730, 0.0
  %v2753 = vadd.f32 %v2751, %v2752
  %v2754 = vsel %vm719, %v2731, 0.0
  %v2755 = vadd.f32 %v2753, %v2754
  %v2756 = vsel %vm719, %v2732, 0.0
  %v2757 = vadd.f32 %v2755, %v2756
  %v2758 = vsel %vm719, %v2733, 0.0
  %v2759 = vadd.f32 %v2757, %v2758
  %v2760 = vsel %vm719, %v2734, 0.0
  %v2761 = vadd.f32 %v2759, %v2760
  %v2762 = vsel %vm719, %v2735, 0.0
  %v2763 = vadd.f32 %v2761, %v2762
  %v2764 = vsel %vm719, %v2736, 0.0
  %v2765 = vadd.f32 %v2763, %v2764
  %v2766 = vsel %vm719, %v2737, 0.0
  %v2767 = vadd.f32 %v2765, %v2766
  %v2768 = vsel %vm719, %v2738, 0.0
  %v2769 = vadd.f32 %v2767, %v2768
  %v2770 = vrot.slane %v2769, 4
  %v2771 = vadd.f32 %v2769, %v2770
  %v2772 = vrot.slane %v2771, 2
  %v2773 = vadd.f32 %v2771, %v2772
  %v2774 = vrot.slane %v2773, 1
  %v2775 = vadd.f32 %v2773, %v2774
  %v2776 = vmul.f32 %v2775, %v1080
  %v2777 = vadd.f32 %v2776, 1e-05
  %v2778 = vrsqrt.pop %v2777
  %v2779 = vmul.f32 %v2707, %v2778
  %v2780 = vmul.f32 %v2708, %v2778
  %v2781 = vmul.f32 %v2709, %v2778
  %v2782 = vmul.f32 %v2710, %v2778
  %v2783 = vmul.f32 %v2711, %v2778
  %v2784 = vmul.f32 %v2712, %v2778
  %v2785 = vmul.f32 %v2713, %v2778
  %v2786 = vmul.f32 %v2714, %v2778
  %v2787 = vmul.f32 %v2715, %v2778
  %v2788 = vmul.f32 %v2716, %v2778
  %v2789 = vmul.f32 %v2717, %v2778
  %v2790 = vmul.f32 %v2718, %v2778
  %v2791 = vmul.f32 %v2719, %v2778
  %v2792 = vmul.f32 %v2720, %v2778
  %v2793 = vmul.f32 %v2721, %v2778
  %v2794 = vmul.f32 %v2722, %v2778
  %v2796 = vlaneseq
  %v2797 = vshrl.u32 %v2796, 7
  %v2798 = vsub.s32 0, %v2797
  %v2799 = vrot.slane %v2667, %v2798
  %v2801 = vmul.f32 %v2779, %v2799
  %v2802 = vmul.f32 %v2780, %v2799
  %v2803 = vmul.f32 %v2781, %v2799
  %v2804 = vmul.f32 %v2782, %v2799
  %v2805 = vmul.f32 %v2783, %v2799
  %v2806 = vmul.f32 %v2784, %v2799
  %v2807 = vmul.f32 %v2785, %v2799
  %v2808 = vmul.f32 %v2786, %v2799
  %v2809 = vmul.f32 %v2787, %v2799
  %v2810 = vmul.f32 %v2788, %v2799
  %v2811 = vmul.f32 %v2789, %v2799
  %v2812 = vmul.f32 %v2790, %v2799
  %v2813 = vmul.f32 %v2791, %v2799
  %v2814 = vmul.f32 %v2792, %v2799
  %v2815 = vmul.f32 %v2793, %v2799
  %v2816 = vmul.f32 %v2794, %v2799
  %v2818 = vlaneseq
  %v2819 = vshrl.u32 %v2818, 7
  %v2820 = vsub.s32 0, %v2819
  %v2821 = vrot.slane %v2668, %v2820
  %v2823 = vadd.f32 %v2801, %v2821
  %v2824 = vadd.f32 %v2802, %v2821
  %v2825 = vadd.f32 %v2803, %v2821
  %v2826 = vadd.f32 %v2804, %v2821
  %v2827 = vadd.f32 %v2805, %v2821
  %v2828 = vadd.f32 %v2806, %v2821
  %v2829 = vadd.f32 %v2807, %v2821
  %v2830 = vadd.f32 %v2808, %v2821
  %v2831 = vadd.f32 %v2809, %v2821
  %v2832 = vadd.f32 %v2810, %v2821
  %v2833 = vadd.f32 %v2811, %v2821
  %v2834 = vadd.f32 %v2812, %v2821
  %v2835 = vadd.f32 %v2813, %v2821
  %v2836 = vadd.f32 %v2814, %v2821
  %v2837 = vadd.f32 %v2815, %v2821
  %v2838 = vadd.f32 %v2816, %v2821
  %v2839 = vadd.f32 %v2438, %v2823
  %v2840 = vadd.f32 %v2439, %v2824
  %v2841 = vadd.f32 %v2440, %v2825
  %v2842 = vadd.f32 %v2441, %v2826
  %v2843 = vadd.f32 %v2442, %v2827
  %v2844 = vadd.f32 %v2443, %v2828
  %v2845 = vadd.f32 %v2444, %v2829
  %v2846 = vadd.f32 %v2445, %v2830
  %v2847 = vadd.f32 %v2446, %v2831
  %v2848 = vadd.f32 %v2447, %v2832
  %v2849 = vadd.f32 %v2448, %v2833
  %v2850 = vadd.f32 %v2449, %v2834
  %v2851 = vadd.f32 %v2450, %v2835
  %v2852 = vadd.f32 %v2451, %v2836
  %v2853 = vadd.f32 %v2452, %v2837
  %v2854 = vadd.f32 %v2453, %v2838
  %v2855 = vmax.f32 %v2839, 0.0
  %v2856 = vmax.f32 %v2840, 0.0
  %v2857 = vmax.f32 %v2841, 0.0
  %v2858 = vmax.f32 %v2842, 0.0
  %v2859 = vmax.f32 %v2843, 0.0
  %v2860 = vmax.f32 %v2844, 0.0
  %v2861 = vmax.f32 %v2845, 0.0
  %v2862 = vmax.f32 %v2846, 0.0
  %v2863 = vmax.f32 %v2847, 0.0
  %v2864 = vmax.f32 %v2848, 0.0
  %v2865 = vmax.f32 %v2849, 0.0
  %v2866 = vmax.f32 %v2850, 0.0
  %v2867 = vmax.f32 %v2851, 0.0
  %v2868 = vmax.f32 %v2852, 0.0
  %v2869 = vmax.f32 %v2853, 0.0
  %v2870 = vmax.f32 %v2854, 0.0
  %2871 = vst.msk [vmem:[%s13] sm:$0xff] %vm719, %v2855
  %2872 = vst.msk [vmem:[%s13 + $0x8] sm:$0xff] %vm719, %v2856
  %2873 = vst.msk [vmem:[%s13 + $0x10] sm:$0xff] %vm719, %v2857
  %2874 = vst.msk [vmem:[%s13 + $0x18] sm:$0xff] %vm719, %v2858
  %2875 = vst.msk [vmem:[%s13 + $0x20] sm:$0xff] %vm719, %v2859
  %2876 = vst.msk [vmem:[%s13 + $0x28] sm:$0xff] %vm719, %v2860
  %2877 = vst.msk [vmem:[%s13 + $0x30] sm:$0xff] %vm719, %v2861
  %2878 = vst.msk [vmem:[%s13 + $0x38] sm:$0xff] %vm719, %v2862
  %2879 = vst.msk [vmem:[%s13 + $0x40] sm:$0xff] %vm719, %v2863
  %2880 = vst.msk [vmem:[%s13 + $0x48] sm:$0xff] %vm719, %v2864
  %2881 = vst.msk [vmem:[%s13 + $0x50] sm:$0xff] %vm719, %v2865
  %2882 = vst.msk [vmem:[%s13 + $0x58] sm:$0xff] %vm719, %v2866
  %2883 = vst.msk [vmem:[%s13 + $0x60] sm:$0xff] %vm719, %v2867
  %2884 = vst.msk [vmem:[%s13 + $0x68] sm:$0xff] %vm719, %v2868
  %2885 = vst.msk [vmem:[%s13 + $0x70] sm:$0xff] %vm719, %v2869
  %2886 = vst.msk [vmem:[%s13 + $0x78] sm:$0xff] %vm719, %v2870
  // Predicated region
  $region54: #{tpu_custom_call.1} parent=0 // pred_check
    _
  $region55: #{tpu_custom_call.1} parent=0 // pred_check_branch
    %2888 = sbr.rel (0) target = $region57
  $region56: #{tpu_custom_call.1} parent=0 // pred_region
    _
  $region57: #{tpu_custom_call.1} parent=0 // pred_fallthru
    _
  // Predicated region
  $region58: #{tpu_custom_call.1} parent=0 // pred_check
    _
  $region59: #{tpu_custom_call.1} parent=0 // pred_check_branch
    %2890 = sbr.rel (0) target = $region61
  $region60: #{tpu_custom_call.1} parent=0 // pred_region
    _
  $region61: #{tpu_custom_call.1} parent=0 // pred_fallthru
    _

</llo_original>
